<compile_context>
chip_gen: v7x
topology: tpu7x:2x2x1
jax: 0.10.0
libtpu: 0.0.40
codegen_flags: <defaults>
</compile_context>

<pallas_src>
from functools import partial

import jax
import jax.numpy as jnp
from jax.experimental import pallas as pl
from jax.experimental.pallas import tpu as pltpu

# ----------------------------- model hyper-params ---------------------------
NUM_NODES = 16
INPUT_DIM = 8
HIDDEN_DIM = 32
OUTPUT_DIM = 4
NUM_LAYERS = 4
BN_EPS = 1e-5
OUT_PAD = 128      # lane-dense padded width (multiple of 128 lanes)


def _round_up(v, m):
    return (v + m - 1) // m * m


# Resident bf16 weight-slab row offsets (rows aligned to the bf16 (16,128)
# sublane tile so every static slice starts on a packing boundary).
R_W0 = 0
R_WL = _round_up(R_W0 + INPUT_DIM, 16)                        # 16
R_MW1 = _round_up(R_WL + (NUM_LAYERS - 1) * HIDDEN_DIM, 16)   # 112
R_MW2 = _round_up(R_MW1 + HIDDEN_DIM, 16)                     # 144
R_MW3 = _round_up(R_MW2 + 2 * HIDDEN_DIM, 16)                 # 208
W_ROWS = _round_up(R_MW3 + HIDDEN_DIM, 16)                    # 240

# Resident f32 bias-slab rows (single (8,128) tile).
RB_B0 = 0
RB_BL = RB_B0 + 1
RB_MB1 = RB_BL + (NUM_LAYERS - 1)                             # 4
RB_MB2 = RB_MB1 + 1                                           # 5
RB_MB3 = RB_MB2 + 1                                           # 6
B_ROWS = 8


# --------------------------------- kernel -----------------------------------
def gnn_kernel(
    a_ref,      # (S, S)        block-diagonal normalized adjacency, bf16
    x_ref,      # (S, Fin)      node features for GB graphs, bf16
    pool_ref,   # (GB, S)       per-graph mean-pool selector, bf16
    w_ref,      # (W_ROWS, 128) consolidated bf16 weight slab (BN folded)
    b_ref,      # (B_ROWS, 128) consolidated f32 bias slab (BN folded)
    out_ref,    # (GB, 128)     f32 output slab
):
    H = HIDDEN_DIM
    a = a_ref[...]                                              # bf16 (S, S)

    # conv_first, reassociated as (A @ X) @ W0' + b0' (BN folded), then ReLU.
    w0 = w_ref[R_W0:R_W0 + INPUT_DIM, :H]
    b0 = b_ref[RB_B0:RB_B0 + 1, :H]
    ax = jnp.dot(a, x_ref[...], preferred_element_type=jnp.float32)
    h = jnp.dot(ax.astype(jnp.bfloat16), w0,
                preferred_element_type=jnp.float32)
    h = jnp.maximum(h + b0, 0.0)                                # f32 (S, H)
    hb = h.astype(jnp.bfloat16)                                 # bf16 copy once

    # Residual GCN blocks (static unroll); dropout = identity at inference.
    for i in range(NUM_LAYERS - 1):
        wi = w_ref[R_WL + i * H:R_WL + (i + 1) * H, :H]
        bi = b_ref[RB_BL + i:RB_BL + i + 1, :H]
        z = jnp.dot(hb, wi, preferred_element_type=jnp.float32)
        z = jnp.dot(a, z.astype(jnp.bfloat16),
                    preferred_element_type=jnp.float32)
        z = jnp.maximum(z + bi, 0.0)
        h = z + h                                               # f32 residual
        hb = h.astype(jnp.bfloat16)                             # reused below

    # global_mean_pool for all GB graphs as one MXU matmul: (GB,S)@(S,H).
    pooled = jnp.dot(pool_ref[...], hb,
                     preferred_element_type=jnp.float32)        # (GB, H)

    # MLP head, once for all GB graphs (dropout layers identity at inference).
    mw1 = w_ref[R_MW1:R_MW1 + H, :2 * H]
    mb1 = b_ref[RB_MB1:RB_MB1 + 1, :2 * H]
    mw2 = w_ref[R_MW2:R_MW2 + 2 * H, :H]
    mb2 = b_ref[RB_MB2:RB_MB2 + 1, :H]
    mw3 = w_ref[R_MW3:R_MW3 + H, :]                             # (H, 128)
    mb3 = b_ref[RB_MB3:RB_MB3 + 1, :]                           # (1, 128)

    m = jnp.maximum(
        jnp.dot(pooled.astype(jnp.bfloat16), mw1,
                preferred_element_type=jnp.float32) + mb1, 0.0)
    m = jnp.maximum(
        jnp.dot(m.astype(jnp.bfloat16), mw2,
                preferred_element_type=jnp.float32) + mb2, 0.0)
    out_ref[...] = (
        jnp.dot(m.astype(jnp.bfloat16), mw3,
                preferred_element_type=jnp.float32) + mb3)


# --------------------------------- wrapper ----------------------------------
@partial(jax.jit, static_argnames=("graphs_per_block",))
def improved_gnn_forward(a_norm, x, params, graphs_per_block=4):
    """a_norm: (B, N, N) f32, x: (B, N, Fin) f32, params: prepared slabs."""
    B, N, _ = a_norm.shape
    GB = graphs_per_block
    assert B % GB == 0, "batch must be divisible by graphs_per_block"
    num_blocks = B // GB
    S = GB * N

    # Block-diagonal normalized adjacency: one (S, S) slab per grid block.
    eye = jnp.eye(GB, dtype=a_norm.dtype)
    a_blk = jnp.einsum(
        "gh,bgij->bgihj", eye, a_norm.reshape(num_blocks, GB, N, N)
    ).reshape(num_blocks, S, S).astype(jnp.bfloat16)

    x_slab = x.reshape(num_blocks, S, INPUT_DIM).astype(jnp.bfloat16)

    # Resident mean-pool selector: row g averages the N nodes of graph g.
    pool = (jnp.repeat(jnp.eye(GB, dtype=jnp.float32), N, axis=1) / N
            ).astype(jnp.bfloat16)                              # (GB, S)

    def resident(arr):   # whole-array block, DMA'd once (constant index_map)
        return pl.BlockSpec(arr.shape, lambda b, _nd=arr.ndim: (0,) * _nd)

    grid_spec = pltpu.PrefetchScalarGridSpec(
        num_scalar_prefetch=0,
        grid=(num_blocks,),
        in_specs=[
            pl.BlockSpec((None, S, S), lambda b: (b, 0, 0)),
            pl.BlockSpec((None, S, INPUT_DIM), lambda b: (b, 0, 0)),
            resident(pool),
            resident(params["wslab"]),
            resident(params["bslab"]),
        ],
        out_specs=pl.BlockSpec((None, GB, OUT_PAD), lambda b: (b, 0, 0)),
    )

    out = pl.pallas_call(
        gnn_kernel,
        out_shape=jax.ShapeDtypeStruct((num_blocks, GB, OUT_PAD), jnp.float32),
        grid_spec=grid_spec,
        compiler_params=pltpu.CompilerParams(
            dimension_semantics=("parallel",)),
    )(a_blk, x_slab, pool, params["wslab"], params["bslab"])

    return out.reshape(B, OUT_PAD)[:, :OUTPUT_DIM]              # (B, O)


# ------------------------------ glue / setup --------------------------------
def build_norm_adj(edge_index, num_nodes):
    """Dense GCN-normalized adjacency: D^-1/2 (A + I) D^-1/2 (PyG convention)."""
    src, dst = edge_index[0], edge_index[1]
    a = jnp.zeros((num_nodes, num_nodes), jnp.float32)
    a = a.at[dst, src].add(1.0)                    # message j -> i lands at row i
    a = a + jnp.eye(num_nodes, dtype=jnp.float32)  # self loops
    deg = jnp.sum(a, axis=1)
    d_inv_sqrt = jnp.where(deg > 0, 1.0 / jnp.sqrt(deg), 0.0)
    return d_inv_sqrt[:, None] * a * d_inv_sqrt[None, :]


def init_raw_params(key):
    ks = list(jax.random.split(key, 16))

    def dense(k, shape, scale=0.1):
        return (scale * jax.random.normal(k, shape)).astype(jnp.float32)

    def bn_params(k, dim):
        # rows: gamma, beta, running_mean, running_var
        g = 1.0 + 0.05 * jax.random.normal(k, (dim,))
        b = 0.05 * jax.random.normal(jax.random.fold_in(k, 1), (dim,))
        m = 0.05 * jax.random.normal(jax.random.fold_in(k, 2), (dim,))
        v = 1.0 + 0.1 * jax.random.uniform(jax.random.fold_in(k, 3), (dim,))
        return jnp.stack([g, b, m, v]).astype(jnp.float32)

    return {
        "w0": dense(ks[0], (INPUT_DIM, HIDDEN_DIM)),
        "b0": dense(ks[1], (1, HIDDEN_DIM)),
        "bn0": bn_params(ks[2], HIDDEN_DIM),
        "wl": dense(ks[3], (NUM_LAYERS - 1, HIDDEN_DIM, HIDDEN_DIM)),
        "bl": dense(ks[4], (NUM_LAYERS - 1, 1, HIDDEN_DIM)),
        "bnl": jnp.stack(
            [bn_params(jax.random.fold_in(ks[5], i), HIDDEN_DIM)
             for i in range(NUM_LAYERS - 1)]
        ),
        "mw1": dense(ks[6], (HIDDEN_DIM, 2 * HIDDEN_DIM)),
        "mb1": dense(ks[7], (1, 2 * HIDDEN_DIM)),
        "mw2": dense(ks[8], (2 * HIDDEN_DIM, HIDDEN_DIM)),
        "mb2": dense(ks[9], (1, HIDDEN_DIM)),
        "mw3": dense(ks[10], (HIDDEN_DIM, OUTPUT_DIM)),
        "mb3": dense(ks[11], (1, OUTPUT_DIM)),
    }


def _fold_bn(w, b, bn):
    """Fold inference-mode BatchNorm into a linear layer's weight/bias."""
    gamma, beta, mean, var = bn[0], bn[1], bn[2], bn[3]
    s = gamma / jnp.sqrt(var + BN_EPS)
    return w * s[None, :], (b - mean[None, :]) * s[None, :] + beta[None, :]


def _pad_lanes(m, width=OUT_PAD):
    return jnp.pad(m, ((0, 0), (0, width - m.shape[1])))


def prepare_params(raw):
    """BN-fold conv layers, then pack everything into two resident slabs:
    a bf16 weight slab (W_ROWS, 128) and an f32 bias slab (B_ROWS, 128)."""
    w0, b0 = _fold_bn(raw["w0"], raw["b0"], raw["bn0"])
    wl_rows, bl_rows = [], []
    for i in range(NUM_LAYERS - 1):
        wi, bi = _fold_bn(raw["wl"][i], raw["bl"][i], raw["bnl"][i])
        wl_rows.append(wi)
        bl_rows.append(bi)

    wslab = jnp.zeros((W_ROWS, OUT_PAD), jnp.float32)
    wslab = wslab.at[R_W0:R_W0 + INPUT_DIM].set(_pad_lanes(w0))
    wslab = wslab.at[R_WL:R_WL + (NUM_LAYERS - 1) * HIDDEN_DIM].set(
        _pad_lanes(jnp.concatenate(wl_rows, axis=0)))
    wslab = wslab.at[R_MW1:R_MW1 + HIDDEN_DIM].set(_pad_lanes(raw["mw1"]))
    wslab = wslab.at[R_MW2:R_MW2 + 2 * HIDDEN_DIM].set(_pad_lanes(raw["mw2"]))
    wslab = wslab.at[R_MW3:R_MW3 + HIDDEN_DIM].set(_pad_lanes(raw["mw3"]))

    bslab = jnp.zeros((B_ROWS, OUT_PAD), jnp.float32)
    bslab = bslab.at[RB_B0:RB_B0 + 1].set(_pad_lanes(b0))
    bslab = bslab.at[RB_BL:RB_BL + NUM_LAYERS - 1].set(
        _pad_lanes(jnp.concatenate(bl_rows, axis=0)))
    bslab = bslab.at[RB_MB1:RB_MB1 + 1].set(_pad_lanes(raw["mb1"]))
    bslab = bslab.at[RB_MB2:RB_MB2 + 1].set(_pad_lanes(raw["mb2"]))
    bslab = bslab.at[RB_MB3:RB_MB3 + 1].set(_pad_lanes(raw["mb3"]))

    return {"wslab": wslab.astype(jnp.bfloat16), "bslab": bslab}


def reference_forward(a, x, raw):
    """Pure-JAX f32 reference matching the PyTorch module (eval mode)."""
    def bn_relu(h, bn):
        gamma, beta, mean, var = bn[0], bn[1], bn[2], bn[3]
        h = (h - mean) / jnp.sqrt(var + BN_EPS) * gamma + beta
        return jnp.maximum(h, 0.0)

    h = a @ (x @ raw["w0"]) + raw["b0"]
    h = bn_relu(h, raw["bn0"])
    for i in range(NUM_LAYERS - 1):
        identity = h
        z = a @ (h @ raw["wl"][i]) + raw["bl"][i]
        z = bn_relu(z, raw["bnl"][i])
        h = z + identity
    pooled = jnp.mean(h, axis=0, keepdims=True)
    m = jnp.maximum(pooled @ raw["mw1"] + raw["mb1"], 0.0)
    m = jnp.maximum(m @ raw["mw2"] + raw["mb2"], 0.0)
    return m @ raw["mw3"] + raw["mb3"]


if __name__ == "__main__":
    key = jax.random.PRNGKey(0)
    k_feat, k_param = jax.random.split(key)

    B = 8                    # total graphs per forward pass
    GRAPHS_PER_BLOCK = 4     # 2 parallel grid blocks (both TCs on v7x);
                             # single-TC chips (v5e/v6e) may use 8 -> 1 block.
    x = jax.random.normal(k_feat, (B, NUM_NODES, INPUT_DIM), dtype=jnp.float32)

    # Per-graph topology: bidirectional ring + one graph-specific chord edge.
    idx = jnp.arange(NUM_NODES, dtype=jnp.int32)
    nxt = (idx + 1) % NUM_NODES
    a_list = []
    for g in range(B):
        chord = (2 + g) % NUM_NODES
        src = jnp.concatenate([idx, nxt, jnp.array([0, chord], jnp.int32)])
        dst = jnp.concatenate([nxt, idx, jnp.array([chord, 0], jnp.int32)])
        a_list.append(build_norm_adj(jnp.stack([src, dst]), NUM_NODES))
    a_norm = jnp.stack(a_list)                                  # (B, N, N)

    raw = init_raw_params(k_param)
    params = prepare_params(raw)

    out = improved_gnn_forward(a_norm, x, params,
                               graphs_per_block=GRAPHS_PER_BLOCK)
    jax.block_until_ready(out)
    assert out.shape == (B, OUTPUT_DIM)

    # Loose check vs. f32 reference (kernel uses bf16 MXU inputs, f32 accum).
    ref = jax.vmap(lambda a, xi: reference_forward(a, xi, raw))(a_norm, x)[:, 0, :]
    assert jnp.allclose(out, ref, atol=1e-1, rtol=1e-1), (out, ref)

    print("KERNEL_OK")
</pallas_src>

<mosaic_0001>
module attributes {stable_mosaic.version = 11 : i64} {
  func.func @gnn_kernel(%arg0: i32, %arg1: memref<1x64x64xbf16, #tpu.memory_space<vmem>>, %arg2: memref<1x64x8xbf16, #tpu.memory_space<vmem>>, %arg3: memref<4x64xbf16, #tpu.memory_space<vmem>>, %arg4: memref<240x128xbf16, #tpu.memory_space<vmem>>, %arg5: memref<8x128xf32, #tpu.memory_space<vmem>>, %arg6: memref<1x4x128xf32, #tpu.memory_space<vmem>>) attributes {dimension_semantics = [#tpu.dimension_semantics<parallel>], iteration_bounds = array<i64: 2>, scalar_prefetch = 0 : i64, scratch_operands = 0 : i64, tpu.core_type = #tpu.core_type<tc>, window_params = [{transform_indices = @transform_0, window_bounds = array<i64: 1, 64, 64>}, {transform_indices = @transform_1, window_bounds = array<i64: 1, 64, 8>}, {pipeline_mode = #tpu.pipeline_mode<synchronous>, transform_indices = @transform_2, window_bounds = array<i64: 4, 64>}, {pipeline_mode = #tpu.pipeline_mode<synchronous>, transform_indices = @transform_3, window_bounds = array<i64: 240, 128>}, {pipeline_mode = #tpu.pipeline_mode<synchronous>, transform_indices = @transform_4, window_bounds = array<i64: 8, 128>}, {transform_indices = @transform_5, window_bounds = array<i64: 1, 4, 128>}]} {
    %c0 = arith.constant 0 : index
    %c0_0 = arith.constant 0 : index
    %c0_1 = arith.constant 0 : index
    %0 = vector.load %arg1[%c0, %c0_0, %c0_1] : memref<1x64x64xbf16, #tpu.memory_space<vmem>>, vector<1x64x64xbf16>
    %1 = vector.shape_cast %0 : vector<1x64x64xbf16> to vector<64x64xbf16>
    %c0_2 = arith.constant 0 : index
    %c0_3 = arith.constant 0 : index
    %2 = vector.load %arg4[%c0_2, %c0_3] : memref<240x128xbf16, #tpu.memory_space<vmem>>, vector<8x32xbf16>
    %c0_4 = arith.constant 0 : index
    %c0_5 = arith.constant 0 : index
    %3 = vector.load %arg5[%c0_4, %c0_5] : memref<8x128xf32, #tpu.memory_space<vmem>>, vector<1x32xf32>
    %c0_6 = arith.constant 0 : index
    %c0_7 = arith.constant 0 : index
    %c0_8 = arith.constant 0 : index
    %4 = vector.load %arg2[%c0_6, %c0_7, %c0_8] : memref<1x64x8xbf16, #tpu.memory_space<vmem>>, vector<1x64x8xbf16>
    %5 = vector.shape_cast %4 : vector<1x64x8xbf16> to vector<64x8xbf16>
    %cst = arith.constant dense<0.000000e+00> : vector<64x8xf32>
    %6 = tpu.matmul %1, %5, %cst {dimension_numbers = #tpu.dot_dimension_numbers<[1], [0], [0], [1], [0, 0, 1, 1], [], []>} : vector<64x64xbf16>, vector<64x8xbf16>, vector<64x8xf32> -> vector<64x8xf32>
    %7 = arith.truncf %6 : vector<64x8xf32> to vector<64x8xbf16>
    %cst_9 = arith.constant dense<0.000000e+00> : vector<64x32xf32>
    %8 = tpu.matmul %7, %2, %cst_9 {dimension_numbers = #tpu.dot_dimension_numbers<[1], [0], [0], [1], [0, 0, 1, 1], [], []>} : vector<64x8xbf16>, vector<8x32xbf16>, vector<64x32xf32> -> vector<64x32xf32>
    %9 = vector.broadcast %3 : vector<1x32xf32> to vector<64x32xf32>
    %10 = arith.addf %8, %9 : vector<64x32xf32>
    %cst_10 = arith.constant 0.000000e+00 : f32
    %11 = vector.broadcast %cst_10 : f32 to vector<64x32xf32>
    %12 = arith.maximumf %10, %11 : vector<64x32xf32>
    %13 = arith.truncf %12 : vector<64x32xf32> to vector<64x32xbf16>
    %c16 = arith.constant 16 : index
    %c0_11 = arith.constant 0 : index
    %14 = vector.load %arg4[%c16, %c0_11] : memref<240x128xbf16, #tpu.memory_space<vmem>>, vector<32x32xbf16>
    %c1 = arith.constant 1 : index
    %c0_12 = arith.constant 0 : index
    %15 = vector.load %arg5[%c1, %c0_12] : memref<8x128xf32, #tpu.memory_space<vmem>>, vector<1x32xf32>
    %cst_13 = arith.constant dense<0.000000e+00> : vector<64x32xf32>
    %16 = tpu.matmul %13, %14, %cst_13 {dimension_numbers = #tpu.dot_dimension_numbers<[1], [0], [0], [1], [0, 0, 1, 1], [], []>} : vector<64x32xbf16>, vector<32x32xbf16>, vector<64x32xf32> -> vector<64x32xf32>
    %17 = arith.truncf %16 : vector<64x32xf32> to vector<64x32xbf16>
    %cst_14 = arith.constant dense<0.000000e+00> : vector<64x32xf32>
    %18 = tpu.matmul %1, %17, %cst_14 {dimension_numbers = #tpu.dot_dimension_numbers<[1], [0], [0], [1], [0, 0, 1, 1], [], []>} : vector<64x64xbf16>, vector<64x32xbf16>, vector<64x32xf32> -> vector<64x32xf32>
    %19 = vector.broadcast %15 : vector<1x32xf32> to vector<64x32xf32>
    %20 = arith.addf %18, %19 : vector<64x32xf32>
    %cst_15 = arith.constant 0.000000e+00 : f32
    %21 = vector.broadcast %cst_15 : f32 to vector<64x32xf32>
    %22 = arith.maximumf %20, %21 : vector<64x32xf32>
    %23 = arith.addf %22, %12 : vector<64x32xf32>
    %24 = arith.truncf %23 : vector<64x32xf32> to vector<64x32xbf16>
    %c48 = arith.constant 48 : index
    %c0_16 = arith.constant 0 : index
    %25 = vector.load %arg4[%c48, %c0_16] : memref<240x128xbf16, #tpu.memory_space<vmem>>, vector<32x32xbf16>
    %c2 = arith.constant 2 : index
    %c0_17 = arith.constant 0 : index
    %26 = vector.load %arg5[%c2, %c0_17] : memref<8x128xf32, #tpu.memory_space<vmem>>, vector<1x32xf32>
    %cst_18 = arith.constant dense<0.000000e+00> : vector<64x32xf32>
    %27 = tpu.matmul %24, %25, %cst_18 {dimension_numbers = #tpu.dot_dimension_numbers<[1], [0], [0], [1], [0, 0, 1, 1], [], []>} : vector<64x32xbf16>, vector<32x32xbf16>, vector<64x32xf32> -> vector<64x32xf32>
    %28 = arith.truncf %27 : vector<64x32xf32> to vector<64x32xbf16>
    %cst_19 = arith.constant dense<0.000000e+00> : vector<64x32xf32>
    %29 = tpu.matmul %1, %28, %cst_19 {dimension_numbers = #tpu.dot_dimension_numbers<[1], [0], [0], [1], [0, 0, 1, 1], [], []>} : vector<64x64xbf16>, vector<64x32xbf16>, vector<64x32xf32> -> vector<64x32xf32>
    %30 = vector.broadcast %26 : vector<1x32xf32> to vector<64x32xf32>
    %31 = arith.addf %29, %30 : vector<64x32xf32>
    %cst_20 = arith.constant 0.000000e+00 : f32
    %32 = vector.broadcast %cst_20 : f32 to vector<64x32xf32>
    %33 = arith.maximumf %31, %32 : vector<64x32xf32>
    %34 = arith.addf %33, %23 : vector<64x32xf32>
    %35 = arith.truncf %34 : vector<64x32xf32> to vector<64x32xbf16>
    %c80 = arith.constant 80 : index
    %c0_21 = arith.constant 0 : index
    %36 = vector.load %arg4[%c80, %c0_21] : memref<240x128xbf16, #tpu.memory_space<vmem>>, vector<32x32xbf16>
    %c3 = arith.constant 3 : index
    %c0_22 = arith.constant 0 : index
    %37 = vector.load %arg5[%c3, %c0_22] : memref<8x128xf32, #tpu.memory_space<vmem>>, vector<1x32xf32>
    %cst_23 = arith.constant dense<0.000000e+00> : vector<64x32xf32>
    %38 = tpu.matmul %35, %36, %cst_23 {dimension_numbers = #tpu.dot_dimension_numbers<[1], [0], [0], [1], [0, 0, 1, 1], [], []>} : vector<64x32xbf16>, vector<32x32xbf16>, vector<64x32xf32> -> vector<64x32xf32>
    %39 = arith.truncf %38 : vector<64x32xf32> to vector<64x32xbf16>
    %cst_24 = arith.constant dense<0.000000e+00> : vector<64x32xf32>
    %40 = tpu.matmul %1, %39, %cst_24 {dimension_numbers = #tpu.dot_dimension_numbers<[1], [0], [0], [1], [0, 0, 1, 1], [], []>} : vector<64x64xbf16>, vector<64x32xbf16>, vector<64x32xf32> -> vector<64x32xf32>
    %41 = vector.broadcast %37 : vector<1x32xf32> to vector<64x32xf32>
    %42 = arith.addf %40, %41 : vector<64x32xf32>
    %cst_25 = arith.constant 0.000000e+00 : f32
    %43 = vector.broadcast %cst_25 : f32 to vector<64x32xf32>
    %44 = arith.maximumf %42, %43 : vector<64x32xf32>
    %45 = arith.addf %44, %34 : vector<64x32xf32>
    %46 = arith.truncf %45 : vector<64x32xf32> to vector<64x32xbf16>
    %c0_26 = arith.constant 0 : index
    %c0_27 = arith.constant 0 : index
    %47 = vector.load %arg3[%c0_26, %c0_27] : memref<4x64xbf16, #tpu.memory_space<vmem>>, vector<4x64xbf16>
    %cst_28 = arith.constant dense<0.000000e+00> : vector<4x32xf32>
    %48 = tpu.matmul %47, %46, %cst_28 {dimension_numbers = #tpu.dot_dimension_numbers<[1], [0], [0], [1], [0, 0, 1, 1], [], []>} : vector<4x64xbf16>, vector<64x32xbf16>, vector<4x32xf32> -> vector<4x32xf32>
    %c112 = arith.constant 112 : index
    %c0_29 = arith.constant 0 : index
    %49 = vector.load %arg4[%c112, %c0_29] : memref<240x128xbf16, #tpu.memory_space<vmem>>, vector<32x64xbf16>
    %c4 = arith.constant 4 : index
    %c0_30 = arith.constant 0 : index
    %50 = vector.load %arg5[%c4, %c0_30] : memref<8x128xf32, #tpu.memory_space<vmem>>, vector<1x64xf32>
    %c144 = arith.constant 144 : index
    %c0_31 = arith.constant 0 : index
    %51 = vector.load %arg4[%c144, %c0_31] : memref<240x128xbf16, #tpu.memory_space<vmem>>, vector<64x32xbf16>
    %c5 = arith.constant 5 : index
    %c0_32 = arith.constant 0 : index
    %52 = vector.load %arg5[%c5, %c0_32] : memref<8x128xf32, #tpu.memory_space<vmem>>, vector<1x32xf32>
    %c208 = arith.constant 208 : index
    %c0_33 = arith.constant 0 : index
    %53 = vector.load %arg4[%c208, %c0_33] : memref<240x128xbf16, #tpu.memory_space<vmem>>, vector<32x128xbf16>
    %c6 = arith.constant 6 : index
    %c0_34 = arith.constant 0 : index
    %54 = vector.load %arg5[%c6, %c0_34] : memref<8x128xf32, #tpu.memory_space<vmem>>, vector<1x128xf32>
    %55 = arith.truncf %48 : vector<4x32xf32> to vector<4x32xbf16>
    %cst_35 = arith.constant dense<0.000000e+00> : vector<4x64xf32>
    %56 = tpu.matmul %55, %49, %cst_35 {dimension_numbers = #tpu.dot_dimension_numbers<[1], [0], [0], [1], [0, 0, 1, 1], [], []>} : vector<4x32xbf16>, vector<32x64xbf16>, vector<4x64xf32> -> vector<4x64xf32>
    %57 = vector.broadcast %50 : vector<1x64xf32> to vector<4x64xf32>
    %58 = arith.addf %56, %57 : vector<4x64xf32>
    %cst_36 = arith.constant 0.000000e+00 : f32
    %59 = vector.broadcast %cst_36 : f32 to vector<4x64xf32>
    %60 = arith.maximumf %58, %59 : vector<4x64xf32>
    %61 = arith.truncf %60 : vector<4x64xf32> to vector<4x64xbf16>
    %cst_37 = arith.constant dense<0.000000e+00> : vector<4x32xf32>
    %62 = tpu.matmul %61, %51, %cst_37 {dimension_numbers = #tpu.dot_dimension_numbers<[1], [0], [0], [1], [0, 0, 1, 1], [], []>} : vector<4x64xbf16>, vector<64x32xbf16>, vector<4x32xf32> -> vector<4x32xf32>
    %63 = vector.broadcast %52 : vector<1x32xf32> to vector<4x32xf32>
    %64 = arith.addf %62, %63 : vector<4x32xf32>
    %cst_38 = arith.constant 0.000000e+00 : f32
    %65 = vector.broadcast %cst_38 : f32 to vector<4x32xf32>
    %66 = arith.maximumf %64, %65 : vector<4x32xf32>
    %67 = arith.truncf %66 : vector<4x32xf32> to vector<4x32xbf16>
    %cst_39 = arith.constant dense<0.000000e+00> : vector<4x128xf32>
    %68 = tpu.matmul %67, %53, %cst_39 {dimension_numbers = #tpu.dot_dimension_numbers<[1], [0], [0], [1], [0, 0, 1, 1], [], []>} : vector<4x32xbf16>, vector<32x128xbf16>, vector<4x128xf32> -> vector<4x128xf32>
    %69 = vector.broadcast %54 : vector<1x128xf32> to vector<4x128xf32>
    %70 = arith.addf %68, %69 : vector<4x128xf32>
    %c0_40 = arith.constant 0 : index
    %c0_41 = arith.constant 0 : index
    %c0_42 = arith.constant 0 : index
    %71 = vector.load %arg6[%c0_40, %c0_41, %c0_42] : memref<1x4x128xf32, #tpu.memory_space<vmem>>, vector<1x4x128xf32>
    %72 = vector.shape_cast %71 : vector<1x4x128xf32> to vector<4x128xf32>
    %73 = vector.shape_cast %70 : vector<4x128xf32> to vector<1x4x128xf32>
    tpu.vector_store %arg6[%c0_40, %c0_41, %c0_42], %73 {strides = array<i32>} : memref<1x4x128xf32, #tpu.memory_space<vmem>>, vector<1x4x128xf32>,
    return
  }
  func.func @transform_0(%arg0: i32) -> (i32, i32, i32) {
    %c0_i32 = arith.constant 0 : i32
    %c0_i32_0 = arith.constant 0 : i32
    %c0_i32_1 = arith.constant 0 : i32
    return %arg0, %c0_i32, %c0_i32_0 : i32, i32, i32
  }
  func.func @transform_1(%arg0: i32) -> (i32, i32, i32) {
    %c0_i32 = arith.constant 0 : i32
    %c0_i32_0 = arith.constant 0 : i32
    %c0_i32_1 = arith.constant 0 : i32
    return %arg0, %c0_i32, %c0_i32_0 : i32, i32, i32
  }
  func.func @transform_2(%arg0: i32) -> (i32, i32) {
    %c0_i32 = arith.constant 0 : i32
    %c0_i32_0 = arith.constant 0 : i32
    %c0_i32_1 = arith.constant 0 : i32
    return %c0_i32, %c0_i32_0 : i32, i32
  }
  func.func @transform_3(%arg0: i32) -> (i32, i32) {
    %c0_i32 = arith.constant 0 : i32
    %c0_i32_0 = arith.constant 0 : i32
    %c0_i32_1 = arith.constant 0 : i32
    return %c0_i32, %c0_i32_0 : i32, i32
  }
  func.func @transform_4(%arg0: i32) -> (i32, i32) {
    %c0_i32 = arith.constant 0 : i32
    %c0_i32_0 = arith.constant 0 : i32
    %c0_i32_1 = arith.constant 0 : i32
    return %c0_i32, %c0_i32_0 : i32, i32
  }
  func.func @transform_5(%arg0: i32) -> (i32, i32, i32) {
    %c0_i32 = arith.constant 0 : i32
    %c0_i32_0 = arith.constant 0 : i32
    %c0_i32_1 = arith.constant 0 : i32
    return %arg0, %c0_i32, %c0_i32_0 : i32, i32, i32
  }
}

</mosaic_0001>

<llo_original>
// kernel: improved_gnn_forward.1
$region0: #{improved_gnn_forward.1}
  #allocation0 [shape = 'u32[]', space=smem, size = 0x4, offset = 0x4, fixed_abs, tag = 'smem constant byte address 0x4 - core index']
  #allocation1 [shape = 'u32[144,128]{1,0:T(1,128)}', space=vmem, size = 0x12000, scoped, tag = 'internal scratch']
  %s0 = inlined_call_operand.vmem [shape: bf16[2,64,64], index: 0, kind: input, shape index: {}]
  %s1 = inlined_call_operand.vmem [shape: bf16[2,64,8], index: 1, kind: input, shape index: {}]
  %s2 = inlined_call_operand.vmem [shape: bf16[4,64], index: 2, kind: input, shape index: {}]
  %s3 = inlined_call_operand.vmem [shape: bf16[240,128], index: 3, kind: input, shape index: {}]
  %s4 = inlined_call_operand.vmem [shape: f32[8,128], index: 4, kind: input, shape index: {}]
  %s5 = inlined_call_operand.vmem [shape: f32[2,4,128], index: 5, kind: output, shape index: {}]
  %s6 = sld [smem:[#allocation0]]
  $region53: #{improved_gnn_forward.1} parent=0
    _
  %s8 = ssub.s32 1, %s6
  %s9 = scalar_select 0, %s8, %s6
  loop: start=0, step=1, limit=4
  $region2: #{improved_gnn_forward.1} parent=0 // loop_pre_header
    _
  $region3: #{improved_gnn_forward.1} parent=0 // loop_header
    %s11 = sphi 0, %s15
    %p12 = scmp.ge.s32.totalorder %s11, 4
    %s21 = sphi 0, %s23
    %s24 = sphi 0, %s21
    %s25 = sphi 0, %s24
    %s41 = sphi 0, %s25
    %s47 = sphi 0, %s49
    %s50 = sphi 0, %s47
    %s51 = sphi 0, %s50
    %s67 = sphi 0, %s51
    %s71 = sphi 0, %s71
    %s73 = sphi 0, %s71
    %s74 = sphi 0, %s73
    %s88 = sphi 0, %s74
    %s92 = sphi 0, %s92
    %s94 = sphi 0, %s92
    %s95 = sphi 0, %s94
    %s109 = sphi 0, %s95
    %s113 = sphi 0, %s113
    %s115 = sphi 0, %s113
    %s116 = sphi 0, %s115
    %s130 = sphi 0, %s116
    %s136 = sphi 0, %s138
    %s139 = sphi 0, %s136
    %s140 = sphi 0, %s139
    %s156 = sphi 0, %s140
  $region4: #{improved_gnn_forward.1} parent=0 // loop_header_branch
    %14 = sbr.rel (%p12) target = $region8
  $region5: #{improved_gnn_forward.1} parent=0 // loop_body
    %s16 = ssub.s32 %s11, 1
    %s17 = ssub.s32 %s11, 2
    %s18 = sadd.s32 %s11, 1
    %s19 = ssub.s32 %s11, %s18
    %p20 = scmp.eq.s32.totalorder %s19, 0
    %s22 = sadd.s32 %s21, 1
    %s23 = scalar_select %p20, %s21, %s22
    %p26 = pneg %p20
    %p27 = scmp.eq.s32.totalorder %s11, 1
    %p28 = por %p26, %p27
    %p29 = scmp.ne.s32.totalorder %s21, %s24
    %p30 = scmp.eq.s32.totalorder %s11, 0
    %p31 = por %p29, %p30
    %p32 = scmp.ne.s32.totalorder %s21, %s24
    %p33 = scmp.eq.s32.totalorder %s16, 1
    %p34 = por %p32, %p33
    %p35 = scmp.ne.s32.totalorder %s24, %s25
    %p36 = scmp.eq.s32.totalorder %s16, 0
    %p37 = por %p35, %p36
    %p38 = scmp.ne.s32.totalorder %s24, %s25
    %p39 = scmp.eq.s32.totalorder %s17, 1
    %p40 = por %p38, %p39
    %p42 = scmp.ne.s32.totalorder %s25, %s41
    %p43 = scmp.eq.s32.totalorder %s17, 0
    %p44 = por %p42, %p43
    %s45 = ssub.s32 %s11, %s18
    %p46 = scmp.eq.s32.totalorder %s45, 0
    %s48 = sadd.s32 %s47, 1
    %s49 = scalar_select %p46, %s47, %s48
    %p52 = pneg %p46
    %p53 = scmp.eq.s32.totalorder %s11, 1
    %p54 = por %p52, %p53
    %p55 = scmp.ne.s32.totalorder %s47, %s50
    %p56 = scmp.eq.s32.totalorder %s11, 0
    %p57 = por %p55, %p56
    %p58 = scmp.ne.s32.totalorder %s47, %s50
    %p59 = scmp.eq.s32.totalorder %s16, 1
    %p60 = por %p58, %p59
    %p61 = scmp.ne.s32.totalorder %s50, %s51
    %p62 = scmp.eq.s32.totalorder %s16, 0
    %p63 = por %p61, %p62
    %p64 = scmp.ne.s32.totalorder %s50, %s51
    %p65 = scmp.eq.s32.totalorder %s17, 1
    %p66 = por %p64, %p65
    %p68 = scmp.ne.s32.totalorder %s51, %s67
    %p69 = scmp.eq.s32.totalorder %s17, 0
    %p70 = por %p68, %p69
    %s72 = sadd.s32 %s71, 1
    %p75 = scmp.eq.s32.totalorder %s11, 1
    %p76 = scmp.ne.s32.totalorder %s71, %s73
    %p77 = scmp.eq.s32.totalorder %s11, 0
    %p78 = por %p76, %p77
    %p79 = scmp.ne.s32.totalorder %s71, %s73
    %p80 = scmp.eq.s32.totalorder %s16, 1
    %p81 = por %p79, %p80
    %p82 = scmp.ne.s32.totalorder %s73, %s74
    %p83 = scmp.eq.s32.totalorder %s16, 0
    %p84 = por %p82, %p83
    %p85 = scmp.ne.s32.totalorder %s73, %s74
    %p86 = scmp.eq.s32.totalorder %s17, 1
    %p87 = por %p85, %p86
    %p89 = scmp.ne.s32.totalorder %s74, %s88
    %p90 = scmp.eq.s32.totalorder %s17, 0
    %p91 = por %p89, %p90
    %s93 = sadd.s32 %s92, 1
    %p96 = scmp.eq.s32.totalorder %s11, 1
    %p97 = scmp.ne.s32.totalorder %s92, %s94
    %p98 = scmp.eq.s32.totalorder %s11, 0
    %p99 = por %p97, %p98
    %p100 = scmp.ne.s32.totalorder %s92, %s94
    %p101 = scmp.eq.s32.totalorder %s16, 1
    %p102 = por %p100, %p101
    %p103 = scmp.ne.s32.totalorder %s94, %s95
    %p104 = scmp.eq.s32.totalorder %s16, 0
    %p105 = por %p103, %p104
    %p106 = scmp.ne.s32.totalorder %s94, %s95
    %p107 = scmp.eq.s32.totalorder %s17, 1
    %p108 = por %p106, %p107
    %p110 = scmp.ne.s32.totalorder %s95, %s109
    %p111 = scmp.eq.s32.totalorder %s17, 0
    %p112 = por %p110, %p111
    %s114 = sadd.s32 %s113, 1
    %p117 = scmp.eq.s32.totalorder %s11, 1
    %p118 = scmp.ne.s32.totalorder %s113, %s115
    %p119 = scmp.eq.s32.totalorder %s11, 0
    %p120 = por %p118, %p119
    %p121 = scmp.ne.s32.totalorder %s113, %s115
    %p122 = scmp.eq.s32.totalorder %s16, 1
    %p123 = por %p121, %p122
    %p124 = scmp.ne.s32.totalorder %s115, %s116
    %p125 = scmp.eq.s32.totalorder %s16, 0
    %p126 = por %p124, %p125
    %p127 = scmp.ne.s32.totalorder %s115, %s116
    %p128 = scmp.eq.s32.totalorder %s17, 1
    %p129 = por %p127, %p128
    %p131 = scmp.ne.s32.totalorder %s116, %s130
    %p132 = scmp.eq.s32.totalorder %s17, 0
    %p133 = por %p131, %p132
    %s134 = ssub.s32 %s11, %s18
    %p135 = scmp.eq.s32.totalorder %s134, 0
    %s137 = sadd.s32 %s136, 1
    %s138 = scalar_select %p135, %s136, %s137
    %p141 = pneg %p135
    %p142 = scmp.eq.s32.totalorder %s11, 1
    %p143 = por %p141, %p142
    %p144 = scmp.ne.s32.totalorder %s136, %s139
    %p145 = scmp.eq.s32.totalorder %s11, 0
    %p146 = por %p144, %p145
    %p147 = scmp.ne.s32.totalorder %s136, %s139
    %p148 = scmp.eq.s32.totalorder %s16, 1
    %p149 = por %p147, %p148
    %p150 = scmp.ne.s32.totalorder %s139, %s140
    %p151 = scmp.eq.s32.totalorder %s16, 0
    %p152 = por %p150, %p151
    %p153 = scmp.ne.s32.totalorder %s139, %s140
    %p154 = scmp.eq.s32.totalorder %s17, 1
    %p155 = por %p153, %p154
    %p157 = scmp.ne.s32.totalorder %s140, %s156
    %p158 = scmp.eq.s32.totalorder %s17, 0
    %p159 = por %p157, %p158
    %p160 = scmp.le.s32.totalorder 1, %s11
    %p161 = scmp.lt.s32.totalorder %s11, 3
    %p162 = pnand %p160, %p161
    %p163 = pneg %p162
    // Predicated region
    $region9: #{improved_gnn_forward.1} parent=5 // pred_check
      _
    $region10: #{improved_gnn_forward.1} parent=5 // pred_check_branch
      %165 = sbr.rel (%p162) target = $region12
    $region11: #{improved_gnn_forward.1} parent=5 // pred_region
      %s166 = ssub.s32 %s11, 1
      // Predicated region
      $region13: #{improved_gnn_forward.1} parent=11 // pred_check
        %p167 = pneg %p84
      $region14: #{improved_gnn_forward.1} parent=11 // pred_check_branch
        %169 = sbr.rel (%p167) target = $region16
      $region15: #{improved_gnn_forward.1} parent=11 // pred_region
        _
      $region16: #{improved_gnn_forward.1} parent=11 // pred_fallthru
        _
      // Predicated region
      $region17: #{improved_gnn_forward.1} parent=11 // pred_check
        %p170 = pneg %p105
      $region18: #{improved_gnn_forward.1} parent=11 // pred_check_branch
        %172 = sbr.rel (%p170) target = $region20
      $region19: #{improved_gnn_forward.1} parent=11 // pred_region
        _
      $region20: #{improved_gnn_forward.1} parent=11 // pred_fallthru
        _
      // Predicated region
      $region21: #{improved_gnn_forward.1} parent=11 // pred_check
        %p173 = pneg %p126
      $region22: #{improved_gnn_forward.1} parent=11 // pred_check_branch
        %175 = sbr.rel (%p173) target = $region24
      $region23: #{improved_gnn_forward.1} parent=11 // pred_region
        _
      $region24: #{improved_gnn_forward.1} parent=11 // pred_fallthru
        _
    $region12: #{improved_gnn_forward.1} parent=5 // pred_fallthru
      _
    %p176 = scmp.lt.s32.totalorder %s11, 2
    // Predicated region
    $region25: #{improved_gnn_forward.1} parent=5 // pred_check
      %p177 = pneg %p176
    $region26: #{improved_gnn_forward.1} parent=5 // pred_check_branch
      %179 = sbr.rel (%p177) target = $region28
    $region27: #{improved_gnn_forward.1} parent=5 // pred_region
      // Predicated region
      $region29: #{improved_gnn_forward.1} parent=27 // pred_check
        %p180 = pneg %p31
      $region30: #{improved_gnn_forward.1} parent=27 // pred_check_branch
        %182 = sbr.rel (%p180) target = $region32
      $region31: #{improved_gnn_forward.1} parent=27 // pred_region
        %p183 = scmp.lt.s32.totalorder %s11, 1
        %s184 = scalar_select %p183, %s11, 1
        %s185 = smul.addr %s184, 8
        %s186 = smul.addr %s185, 4
        %s187 = scalar_lea.vmem %s0, %s186
      $region32: #{improved_gnn_forward.1} parent=27 // pred_fallthru
        _
      // Predicated region
      $region33: #{improved_gnn_forward.1} parent=27 // pred_check
        %p188 = pneg %p57
      $region34: #{improved_gnn_forward.1} parent=27 // pred_check_branch
        %190 = sbr.rel (%p188) target = $region36
      $region35: #{improved_gnn_forward.1} parent=27 // pred_region
        %p191 = scmp.lt.s32.totalorder %s11, 1
        %s192 = scalar_select %p191, %s11, 1
        %s193 = smul.addr %s192, 8
        %s194 = smul.addr %s193, 4
        %s195 = scalar_lea.vmem %s1, %s194
      $region36: #{improved_gnn_forward.1} parent=27 // pred_fallthru
        _
    $region28: #{improved_gnn_forward.1} parent=5 // pred_fallthru
      _
    %p196 = scmp.le.s32.totalorder 1, %s11
    %p197 = scmp.lt.s32.totalorder %s11, 3
    %p198 = pnand %p196, %p197
    %p199 = pneg %p198
    // Predicated region
    $region37: #{improved_gnn_forward.1} parent=5 // pred_check
      _
    $region38: #{improved_gnn_forward.1} parent=5 // pred_check_branch
      %201 = sbr.rel (%p198) target = $region40
    $region39: #{improved_gnn_forward.1} parent=5 // pred_region
      %s202 = ssub.s32 %s11, 1
      %p203 = scmp.lt.s32.totalorder %s16, 1
      %s204 = scalar_select %p203, %s16, 1
      %s205 = smul.addr %s204, 8
      %s206 = smul.addr %s205, 4
      %s207 = scalar_lea.vmem %s0, %s206
      %p208 = pneg %p37
      %p209 = pneg %p34
      %p210 = scmp.lt.s32.totalorder %s16, 1
      %s211 = scalar_select %p210, %s16, 1
      %s212 = smul.addr %s211, 8
      %s213 = smul.addr %s212, 4
      %s214 = scalar_lea.vmem %s1, %s213
      %p215 = pneg %p63
      %p216 = pneg %p60
      %p217 = pneg %p84
      %p218 = pneg %p81
      %p219 = pneg %p105
      %p220 = pneg %p102
      %p221 = pneg %p126
      %p222 = pneg %p123
      %p223 = pneg %p152
      %p224 = pneg %p149
      %p225 = scmp.lt.s32.totalorder %s16, 1
      %s226 = scalar_select %p225, %s16, 1
      %s227 = smul.addr %s226, 4
      %s228 = scalar_lea.vmem %s5, %s227
      %p229 = scmp.lt.s32.totalorder %s16, 1
      %s230 = scalar_select %p229, %s16, 1
      %s231 = smul.addr %s230, 8
      %s232 = smul.addr %s231, 4
      %s233 = scalar_lea.vmem %s0, %s232
      %p234 = scmp.lt.s32.totalorder %s16, 1
      %s235 = scalar_select %p234, %s16, 1
      %s236 = smul.addr %s235, 8
      %s237 = smul.addr %s236, 4
      %s238 = scalar_lea.vmem %s1, %s237
      %p239 = scmp.lt.s32.totalorder %s16, 1
      %s240 = scalar_select %p239, %s16, 1
      %s241 = smul.addr %s240, 4
      %s242 = scalar_lea.vmem %s5, %s241
      %v244 = vld [vmem:[%s233] sm:$0xf]
      %v245 = vld [vmem:[%s233 + $0x4] sm:$0xf]
      %v246 = vld [vmem:[%s233 + $0x8] sm:$0xf]
      %v247 = vld [vmem:[%s233 + $0xc] sm:$0xf]
      %v248 = vld [vmem:[%s233 + $0x10] sm:$0xf]
      %v249 = vld [vmem:[%s233 + $0x14] sm:$0xf]
      %v250 = vld [vmem:[%s233 + $0x18] sm:$0xf]
      %v251 = vld [vmem:[%s233 + $0x1c] sm:$0xf]
      %v252 = vld [vmem:[%s3] sm:$0xf]
      %v253 = vld [vmem:[%s4] sm:$0x1]
      %v254 = vld [vmem:[%s238] sm:$0xf]
      %v255 = vld [vmem:[%s238 + $0x4] sm:$0xf]
      %v256 = vld [vmem:[%s238 + $0x8] sm:$0xf]
      %v257 = vld [vmem:[%s238 + $0xc] sm:$0xf]
      %v258 = vld [vmem:[%s238 + $0x10] sm:$0xf]
      %v259 = vld [vmem:[%s238 + $0x14] sm:$0xf]
      %v260 = vld [vmem:[%s238 + $0x18] sm:$0xf]
      %v261 = vld [vmem:[%s238 + $0x1c] sm:$0xf]
      %v270 = vunpack.c.l.b16 %v244
      %v271 = vunpack.c.l.b16 %v245
      %v272 = vunpack.c.l.b16 %v246
      %v273 = vunpack.c.l.b16 %v247
      %v274 = vunpack.c.l.b16 %v248
      %v275 = vunpack.c.l.b16 %v249
      %v276 = vunpack.c.l.b16 %v250
      %v277 = vunpack.c.l.b16 %v251
      %v278 = vpack.c.b16 %v271, %v270
      %v279 = vpack.c.b16 %v273, %v272
      %v280 = vpack.c.b16 %v275, %v274
      %v281 = vpack.c.b16 %v277, %v276
      %v290 = vunpack.c.l.b16 %v254
      %v291 = vunpack.c.l.b16 %v255
      %v292 = vunpack.c.l.b16 %v256
      %v293 = vunpack.c.l.b16 %v257
      %v294 = vunpack.c.l.b16 %v258
      %v295 = vunpack.c.l.b16 %v259
      %v296 = vunpack.c.l.b16 %v260
      %v297 = vunpack.c.l.b16 %v261
      %v298 = vpack.c.b16 %v291, %v290
      %v299 = vpack.c.b16 %v293, %v292
      %v300 = vpack.c.b16 %v295, %v294
      %v301 = vpack.c.b16 %v297, %v296
      %vm306 = vcmask 523264
      %v308 = vsel %vm306, %v278, 0
      %v311 = vsel %vm306, %v279, 0
      %v314 = vsel %vm306, %v280, 0
      %v317 = vsel %vm306, %v281, 0
      %319 = vmatprep.subr.bf16.mxu0 0
      %320 = vmatpush1.bf16.msra.mxu0 %v298
      %321 = vmatprep.subr.bf16.mxu0 0
      %322 = vmatpush1.bf16.msra.mxu0 %v299
      %323 = vmatprep.subr.bf16.mxu0 0
      %324 = vmatpush1.bf16.msra.mxu0 %v300
      %325 = vmatprep.subr.bf16.mxu0 0
      %326 = vmatpush1.bf16.msra.mxu0 %v301
      %327 = vmatprep.subr.bf16.mxu0 0
      %328 = vmatpush1.bf16.msra.mxu0 0
      %329 = vmatprep.subr.bf16.mxu0 0
      %330 = vmatpush1.bf16.msra.mxu0 0
      %331 = vmatprep.subr.bf16.mxu0 0
      %332 = vmatpush1.bf16.msra.mxu0 0
      %333 = vmatprep.subr.bf16.mxu0 0
      %334 = vmatpush1.bf16.msra.mxu0 0
      %335 = vmatprep.subr.bf16.mxu0 0
      %336 = vmatpush1.bf16.msra.mxu0 0
      %337 = vmatprep.subr.bf16.mxu0 0
      %338 = vmatpush1.bf16.msra.mxu0 0
      %339 = vmatprep.subr.bf16.mxu0 0
      %340 = vmatpush1.bf16.msra.mxu0 0
      %341 = vmatprep.subr.bf16.mxu0 0
      %342 = vmatpush1.bf16.msra.mxu0 0
      %343 = vmatprep.subr.bf16.mxu0 0
      %344 = vmatpush1.bf16.msra.mxu0 0
      %345 = vmatprep.subr.bf16.mxu0 0
      %346 = vmatpush1.bf16.msra.mxu0 0
      %347 = vmatprep.subr.bf16.mxu0 0
      %348 = vmatpush1.bf16.msra.mxu0 0
      %349 = vmatprep.subr.bf16.mxu0 0
      %350 = vmatpush1.bf16.msra.mxu0 0
      %351 = vmatprep.mubr.bf16.mxu0 0
      %352 = vmatmul.mubr.bf16.gmra.mrb[0].mxu0 %v308
      %v353 = vpop.f32.mrb[0].mxu0
      %v354 = vadd.f32 0.0, %v353
      %v355 = vpop.f32.mrb[0].mxu0
      %v356 = vpop.f32.mrb[0].mxu0
      %v357 = vadd.f32 0.0, %v356
      %v358 = vpop.f32.mrb[0].mxu0
      %359 = vmatprep.mubr.bf16.mxu0 0
      %360 = vmatmul.mubr.bf16.gmra.mrb[0].mxu0 %v311
      %v361 = vpop.f32.mrb[0].mxu0
      %v362 = vadd.f32 0.0, %v361
      %v363 = vpop.f32.mrb[0].mxu0
      %v364 = vpop.f32.mrb[0].mxu0
      %v365 = vadd.f32 0.0, %v364
      %v366 = vpop.f32.mrb[0].mxu0
      %367 = vmatprep.mubr.bf16.mxu0 0
      %368 = vmatmul.mubr.bf16.gmra.mrb[0].mxu0 %v314
      %v369 = vpop.f32.mrb[0].mxu0
      %v370 = vadd.f32 0.0, %v369
      %v371 = vpop.f32.mrb[0].mxu0
      %v372 = vpop.f32.mrb[0].mxu0
      %v373 = vadd.f32 0.0, %v372
      %v374 = vpop.f32.mrb[0].mxu0
      %375 = vmatprep.mubr.bf16.mxu0 0
      %376 = vmatmul.mubr.bf16.gmra.mrb[0].mxu0 %v317
      %v377 = vpop.f32.mrb[0].mxu0
      %v378 = vadd.f32 0.0, %v377
      %v379 = vpop.f32.mrb[0].mxu0
      %v380 = vpop.f32.mrb[0].mxu0
      %v381 = vadd.f32 0.0, %v380
      %v382 = vpop.f32.mrb[0].mxu0
      %383 = vdwg.mxu0
      %v384 = vpack.c.bf16 %v357, %v354
      %v385 = vpack.c.bf16 %v365, %v362
      %v386 = vpack.c.bf16 %v373, %v370
      %v387 = vpack.c.bf16 %v381, %v378
      %v388 = vlaneseq
      %v389 = vshrl.u32 %v388, 7
      %v390 = vsub.s32 0, %v389
      %v391 = vrot.slane %v253, %v390
      %vm392 = vcmask 64512
      %v394 = vsel %vm392, %v384, 0
      %v397 = vsel %vm392, %v385, 0
      %v400 = vsel %vm392, %v386, 0
      %v403 = vsel %vm392, %v387, 0
      %vm405 = vcmask 1043456
      %v407 = vsel %vm405, %v252, 0
      %409 = vmatprep.subr.bf16.mxu0 0
      %410 = vmatpush1.bf16.msra.mxu0 %v407
      %411 = vmatprep.subr.bf16.mxu0 0
      %412 = vmatpush1.bf16.msra.mxu0 0
      %413 = vmatprep.subr.bf16.mxu0 0
      %414 = vmatpush1.bf16.msra.mxu0 0
      %415 = vmatprep.subr.bf16.mxu0 0
      %416 = vmatpush1.bf16.msra.mxu0 0
      %417 = vmatprep.subr.bf16.mxu0 0
      %418 = vmatpush1.bf16.msra.mxu0 0
      %419 = vmatprep.subr.bf16.mxu0 0
      %420 = vmatpush1.bf16.msra.mxu0 0
      %421 = vmatprep.subr.bf16.mxu0 0
      %422 = vmatpush1.bf16.msra.mxu0 0
      %423 = vmatprep.subr.bf16.mxu0 0
      %424 = vmatpush1.bf16.msra.mxu0 0
      %425 = vmatprep.subr.bf16.mxu0 0
      %426 = vmatpush1.bf16.msra.mxu0 0
      %427 = vmatprep.subr.bf16.mxu0 0
      %428 = vmatpush1.bf16.msra.mxu0 0
      %429 = vmatprep.subr.bf16.mxu0 0
      %430 = vmatpush1.bf16.msra.mxu0 0
      %431 = vmatprep.subr.bf16.mxu0 0
      %432 = vmatpush1.bf16.msra.mxu0 0
      %433 = vmatprep.subr.bf16.mxu0 0
      %434 = vmatpush1.bf16.msra.mxu0 0
      %435 = vmatprep.subr.bf16.mxu0 0
      %436 = vmatpush1.bf16.msra.mxu0 0
      %437 = vmatprep.subr.bf16.mxu0 0
      %438 = vmatpush1.bf16.msra.mxu0 0
      %439 = vmatprep.subr.bf16.mxu0 0
      %440 = vmatpush1.bf16.msra.mxu0 0
      %441 = vmatprep.mubr.bf16.mxu0 0
      %442 = vmatmul.mubr.bf16.gmra.mrb[0].mxu0 %v394
      %v443 = vpop.f32.mrb[0].mxu0
      %v444 = vadd.f32 %v391, %v443
      %v445 = vpop.f32.mrb[0].mxu0
      %v446 = vpop.f32.mrb[0].mxu0
      %v447 = vadd.f32 %v391, %v446
      %v448 = vpop.f32.mrb[0].mxu0
      %449 = vmatprep.mubr.bf16.mxu0 0
      %450 = vmatmul.mubr.bf16.gmra.mrb[0].mxu0 %v397
      %v451 = vpop.f32.mrb[0].mxu0
      %v452 = vadd.f32 %v391, %v451
      %v453 = vpop.f32.mrb[0].mxu0
      %v454 = vpop.f32.mrb[0].mxu0
      %v455 = vadd.f32 %v391, %v454
      %v456 = vpop.f32.mrb[0].mxu0
      %457 = vmatprep.mubr.bf16.mxu0 0
      %458 = vmatmul.mubr.bf16.gmra.mrb[0].mxu0 %v400
      %v459 = vpop.f32.mrb[0].mxu0
      %v460 = vadd.f32 %v391, %v459
      %v461 = vpop.f32.mrb[0].mxu0
      %v462 = vpop.f32.mrb[0].mxu0
      %v463 = vadd.f32 %v391, %v462
      %v464 = vpop.f32.mrb[0].mxu0
      %465 = vmatprep.mubr.bf16.mxu0 0
      %466 = vmatmul.mubr.bf16.gmra.mrb[0].mxu0 %v403
      %v467 = vpop.f32.mrb[0].mxu0
      %v468 = vadd.f32 %v391, %v467
      %v469 = vpop.f32.mrb[0].mxu0
      %v470 = vpop.f32.mrb[0].mxu0
      %v471 = vadd.f32 %v391, %v470
      %v472 = vpop.f32.mrb[0].mxu0
      %473 = vdwg.mxu0
      %v474 = vmax.f32 %v444, 0.0
      %v475 = vmax.f32 %v447, 0.0
      %v476 = vmax.f32 %v452, 0.0
      %v477 = vmax.f32 %v455, 0.0
      %v478 = vmax.f32 %v460, 0.0
      %v479 = vmax.f32 %v463, 0.0
      %v480 = vmax.f32 %v468, 0.0
      %v481 = vmax.f32 %v471, 0.0
      %v482 = vpack.c.bf16 %v475, %v474
      %v483 = vpack.c.bf16 %v477, %v476
      %v484 = vpack.c.bf16 %v479, %v478
      %v485 = vpack.c.bf16 %v481, %v480
      %v486 = vld [vmem:[%s3 + $0x8] sm:$0xf]
      %v487 = vld [vmem:[%s3 + $0xc] sm:$0xf]
      %v488 = vld [vmem:[%s3 + $0x10] sm:$0xf]
      %v489 = vld [vmem:[%s3 + $0x14] sm:$0xf]
      %v490 = vld [vmem:[%s4 + $0x1] sm:$0x1]
      %v495 = vunpack.c.l.b16 %v486
      %v496 = vunpack.c.l.b16 %v487
      %v497 = vunpack.c.l.b16 %v488
      %v498 = vunpack.c.l.b16 %v489
      %v499 = vpack.c.b16 %v496, %v495
      %v500 = vpack.c.b16 %v498, %v497
      %vm503 = vcmask 261120
      %v505 = vsel %vm503, %v482, 0
      %v508 = vsel %vm503, %v483, 0
      %v511 = vsel %vm503, %v484, 0
      %v514 = vsel %vm503, %v485, 0
      %516 = vmatprep.subr.bf16.mxu0 0
      %517 = vmatpush1.bf16.msra.mxu0 %v499
      %518 = vmatprep.subr.bf16.mxu0 0
      %519 = vmatpush1.bf16.msra.mxu0 %v500
      %520 = vmatprep.subr.bf16.mxu0 0
      %521 = vmatpush1.bf16.msra.mxu0 0
      %522 = vmatprep.subr.bf16.mxu0 0
      %523 = vmatpush1.bf16.msra.mxu0 0
      %524 = vmatprep.subr.bf16.mxu0 0
      %525 = vmatpush1.bf16.msra.mxu0 0
      %526 = vmatprep.subr.bf16.mxu0 0
      %527 = vmatpush1.bf16.msra.mxu0 0
      %528 = vmatprep.subr.bf16.mxu0 0
      %529 = vmatpush1.bf16.msra.mxu0 0
      %530 = vmatprep.subr.bf16.mxu0 0
      %531 = vmatpush1.bf16.msra.mxu0 0
      %532 = vmatprep.subr.bf16.mxu0 0
      %533 = vmatpush1.bf16.msra.mxu0 0
      %534 = vmatprep.subr.bf16.mxu0 0
      %535 = vmatpush1.bf16.msra.mxu0 0
      %536 = vmatprep.subr.bf16.mxu0 0
      %537 = vmatpush1.bf16.msra.mxu0 0
      %538 = vmatprep.subr.bf16.mxu0 0
      %539 = vmatpush1.bf16.msra.mxu0 0
      %540 = vmatprep.subr.bf16.mxu0 0
      %541 = vmatpush1.bf16.msra.mxu0 0
      %542 = vmatprep.subr.bf16.mxu0 0
      %543 = vmatpush1.bf16.msra.mxu0 0
      %544 = vmatprep.subr.bf16.mxu0 0
      %545 = vmatpush1.bf16.msra.mxu0 0
      %546 = vmatprep.subr.bf16.mxu0 0
      %547 = vmatpush1.bf16.msra.mxu0 0
      %548 = vmatprep.mubr.bf16.mxu0 0
      %549 = vmatmul.mubr.bf16.gmra.mrb[0].mxu0 %v505
      %v550 = vpop.f32.mrb[0].mxu0
      %v551 = vadd.f32 0.0, %v550
      %v552 = vpop.f32.mrb[0].mxu0
      %v553 = vpop.f32.mrb[0].mxu0
      %v554 = vadd.f32 0.0, %v553
      %v555 = vpop.f32.mrb[0].mxu0
      %556 = vmatprep.mubr.bf16.mxu0 0
      %557 = vmatmul.mubr.bf16.gmra.mrb[0].mxu0 %v508
      %v558 = vpop.f32.mrb[0].mxu0
      %v559 = vadd.f32 0.0, %v558
      %v560 = vpop.f32.mrb[0].mxu0
      %v561 = vpop.f32.mrb[0].mxu0
      %v562 = vadd.f32 0.0, %v561
      %v563 = vpop.f32.mrb[0].mxu0
      %564 = vmatprep.mubr.bf16.mxu0 0
      %565 = vmatmul.mubr.bf16.gmra.mrb[0].mxu0 %v511
      %v566 = vpop.f32.mrb[0].mxu0
      %v567 = vadd.f32 0.0, %v566
      %v568 = vpop.f32.mrb[0].mxu0
      %v569 = vpop.f32.mrb[0].mxu0
      %v570 = vadd.f32 0.0, %v569
      %v571 = vpop.f32.mrb[0].mxu0
      %572 = vmatprep.mubr.bf16.mxu0 0
      %573 = vmatmul.mubr.bf16.gmra.mrb[0].mxu0 %v514
      %v574 = vpop.f32.mrb[0].mxu0
      %v575 = vadd.f32 0.0, %v574
      %v576 = vpop.f32.mrb[0].mxu0
      %v577 = vpop.f32.mrb[0].mxu0
      %v578 = vadd.f32 0.0, %v577
      %v579 = vpop.f32.mrb[0].mxu0
      %580 = vdwg.mxu0
      %v581 = vpack.c.bf16 %v554, %v551
      %v582 = vpack.c.bf16 %v562, %v559
      %v583 = vpack.c.bf16 %v570, %v567
      %v584 = vpack.c.bf16 %v578, %v575
      %v585 = vlaneseq
      %v586 = vshrl.u32 %v585, 7
      %v587 = vsub.s32 0, %v586
      %v588 = vrot.slane %v490, %v587
      %589 = vmatprep.subr.bf16.mxu0 0
      %590 = vmatpush1.bf16.msra.mxu0 %v581
      %591 = vmatprep.subr.bf16.mxu0 0
      %592 = vmatpush1.bf16.msra.mxu0 %v582
      %593 = vmatprep.subr.bf16.mxu0 0
      %594 = vmatpush1.bf16.msra.mxu0 %v583
      %595 = vmatprep.subr.bf16.mxu0 0
      %596 = vmatpush1.bf16.msra.mxu0 %v584
      %597 = vmatprep.subr.bf16.mxu0 0
      %598 = vmatpush1.bf16.msra.mxu0 0
      %599 = vmatprep.subr.bf16.mxu0 0
      %600 = vmatpush1.bf16.msra.mxu0 0
      %601 = vmatprep.subr.bf16.mxu0 0
      %602 = vmatpush1.bf16.msra.mxu0 0
      %603 = vmatprep.subr.bf16.mxu0 0
      %604 = vmatpush1.bf16.msra.mxu0 0
      %605 = vmatprep.subr.bf16.mxu0 0
      %606 = vmatpush1.bf16.msra.mxu0 0
      %607 = vmatprep.subr.bf16.mxu0 0
      %608 = vmatpush1.bf16.msra.mxu0 0
      %609 = vmatprep.subr.bf16.mxu0 0
      %610 = vmatpush1.bf16.msra.mxu0 0
      %611 = vmatprep.subr.bf16.mxu0 0
      %612 = vmatpush1.bf16.msra.mxu0 0
      %613 = vmatprep.subr.bf16.mxu0 0
      %614 = vmatpush1.bf16.msra.mxu0 0
      %615 = vmatprep.subr.bf16.mxu0 0
      %616 = vmatpush1.bf16.msra.mxu0 0
      %617 = vmatprep.subr.bf16.mxu0 0
      %618 = vmatpush1.bf16.msra.mxu0 0
      %619 = vmatprep.subr.bf16.mxu0 0
      %620 = vmatpush1.bf16.msra.mxu0 0
      %621 = vmatprep.mubr.bf16.mxu0 0
      %622 = vmatmul.mubr.bf16.gmra.mrb[0].mxu0 %v308
      %v623 = vpop.f32.mrb[0].mxu0
      %v624 = vadd.f32 %v588, %v623
      %v625 = vpop.f32.mrb[0].mxu0
      %v626 = vpop.f32.mrb[0].mxu0
      %v627 = vadd.f32 %v588, %v626
      %v628 = vpop.f32.mrb[0].mxu0
      %629 = vmatprep.mubr.bf16.mxu0 0
      %630 = vmatmul.mubr.bf16.gmra.mrb[0].mxu0 %v311
      %v631 = vpop.f32.mrb[0].mxu0
      %v632 = vadd.f32 %v588, %v631
      %v633 = vpop.f32.mrb[0].mxu0
      %v634 = vpop.f32.mrb[0].mxu0
      %v635 = vadd.f32 %v588, %v634
      %v636 = vpop.f32.mrb[0].mxu0
      %637 = vmatprep.mubr.bf16.mxu0 0
      %638 = vmatmul.mubr.bf16.gmra.mrb[0].mxu0 %v314
      %v639 = vpop.f32.mrb[0].mxu0
      %v640 = vadd.f32 %v588, %v639
      %v641 = vpop.f32.mrb[0].mxu0
      %v642 = vpop.f32.mrb[0].mxu0
      %v643 = vadd.f32 %v588, %v642
      %v644 = vpop.f32.mrb[0].mxu0
      %645 = vmatprep.mubr.bf16.mxu0 0
      %646 = vmatmul.mubr.bf16.gmra.mrb[0].mxu0 %v317
      %v647 = vpop.f32.mrb[0].mxu0
      %v648 = vadd.f32 %v588, %v647
      %v649 = vpop.f32.mrb[0].mxu0
      %v650 = vpop.f32.mrb[0].mxu0
      %v651 = vadd.f32 %v588, %v650
      %v652 = vpop.f32.mrb[0].mxu0
      %653 = vdwg.mxu0
      %v654 = vmax.f32 %v624, 0.0
      %v655 = vmax.f32 %v627, 0.0
      %v656 = vmax.f32 %v632, 0.0
      %v657 = vmax.f32 %v635, 0.0
      %v658 = vmax.f32 %v640, 0.0
      %v659 = vmax.f32 %v643, 0.0
      %v660 = vmax.f32 %v648, 0.0
      %v661 = vmax.f32 %v651, 0.0
      %v662 = vadd.f32 %v654, %v474
      %v663 = vadd.f32 %v655, %v475
      %v664 = vadd.f32 %v656, %v476
      %v665 = vadd.f32 %v657, %v477
      %v666 = vadd.f32 %v658, %v478
      %v667 = vadd.f32 %v659, %v479
      %v668 = vadd.f32 %v660, %v480
      %v669 = vadd.f32 %v661, %v481
      %v670 = vpack.c.bf16 %v663, %v662
      %v671 = vpack.c.bf16 %v665, %v664
      %v672 = vpack.c.bf16 %v667, %v666
      %v673 = vpack.c.bf16 %v669, %v668
      %v674 = vld [vmem:[%s3 + $0x18] sm:$0xf]
      %v675 = vld [vmem:[%s3 + $0x1c] sm:$0xf]
      %v676 = vld [vmem:[%s3 + $0x20] sm:$0xf]
      %v677 = vld [vmem:[%s3 + $0x24] sm:$0xf]
      %v678 = vld [vmem:[%s4 + $0x2] sm:$0x1]
      %v683 = vunpack.c.l.b16 %v674
      %v684 = vunpack.c.l.b16 %v675
      %v685 = vunpack.c.l.b16 %v676
      %v686 = vunpack.c.l.b16 %v677
      %v687 = vpack.c.b16 %v684, %v683
      %v688 = vpack.c.b16 %v686, %v685
      %v692 = vsel %vm503, %v670, 0
      %v695 = vsel %vm503, %v671, 0
      %v698 = vsel %vm503, %v672, 0
      %v701 = vsel %vm503, %v673, 0
      %703 = vmatprep.subr.bf16.mxu0 0
      %704 = vmatpush1.bf16.msra.mxu0 %v687
      %705 = vmatprep.subr.bf16.mxu0 0
      %706 = vmatpush1.bf16.msra.mxu0 %v688
      %707 = vmatprep.subr.bf16.mxu0 0
      %708 = vmatpush1.bf16.msra.mxu0 0
      %709 = vmatprep.subr.bf16.mxu0 0
      %710 = vmatpush1.bf16.msra.mxu0 0
      %711 = vmatprep.subr.bf16.mxu0 0
      %712 = vmatpush1.bf16.msra.mxu0 0
      %713 = vmatprep.subr.bf16.mxu0 0
      %714 = vmatpush1.bf16.msra.mxu0 0
      %715 = vmatprep.subr.bf16.mxu0 0
      %716 = vmatpush1.bf16.msra.mxu0 0
      %717 = vmatprep.subr.bf16.mxu0 0
      %718 = vmatpush1.bf16.msra.mxu0 0
      %719 = vmatprep.subr.bf16.mxu0 0
      %720 = vmatpush1.bf16.msra.mxu0 0
      %721 = vmatprep.subr.bf16.mxu0 0
      %722 = vmatpush1.bf16.msra.mxu0 0
      %723 = vmatprep.subr.bf16.mxu0 0
      %724 = vmatpush1.bf16.msra.mxu0 0
      %725 = vmatprep.subr.bf16.mxu0 0
      %726 = vmatpush1.bf16.msra.mxu0 0
      %727 = vmatprep.subr.bf16.mxu0 0
      %728 = vmatpush1.bf16.msra.mxu0 0
      %729 = vmatprep.subr.bf16.mxu0 0
      %730 = vmatpush1.bf16.msra.mxu0 0
      %731 = vmatprep.subr.bf16.mxu0 0
      %732 = vmatpush1.bf16.msra.mxu0 0
      %733 = vmatprep.subr.bf16.mxu0 0
      %734 = vmatpush1.bf16.msra.mxu0 0
      %735 = vmatprep.mubr.bf16.mxu0 0
      %736 = vmatmul.mubr.bf16.gmra.mrb[0].mxu0 %v692
      %v737 = vpop.f32.mrb[0].mxu0
      %v738 = vadd.f32 0.0, %v737
      %v739 = vpop.f32.mrb[0].mxu0
      %v740 = vpop.f32.mrb[0].mxu0
      %v741 = vadd.f32 0.0, %v740
      %v742 = vpop.f32.mrb[0].mxu0
      %743 = vmatprep.mubr.bf16.mxu0 0
      %744 = vmatmul.mubr.bf16.gmra.mrb[0].mxu0 %v695
      %v745 = vpop.f32.mrb[0].mxu0
      %v746 = vadd.f32 0.0, %v745
      %v747 = vpop.f32.mrb[0].mxu0
      %v748 = vpop.f32.mrb[0].mxu0
      %v749 = vadd.f32 0.0, %v748
      %v750 = vpop.f32.mrb[0].mxu0
      %751 = vmatprep.mubr.bf16.mxu0 0
      %752 = vmatmul.mubr.bf16.gmra.mrb[0].mxu0 %v698
      %v753 = vpop.f32.mrb[0].mxu0
      %v754 = vadd.f32 0.0, %v753
      %v755 = vpop.f32.mrb[0].mxu0
      %v756 = vpop.f32.mrb[0].mxu0
      %v757 = vadd.f32 0.0, %v756
      %v758 = vpop.f32.mrb[0].mxu0
      %759 = vmatprep.mubr.bf16.mxu0 0
      %760 = vmatmul.mubr.bf16.gmra.mrb[0].mxu0 %v701
      %v761 = vpop.f32.mrb[0].mxu0
      %v762 = vadd.f32 0.0, %v761
      %v763 = vpop.f32.mrb[0].mxu0
      %v764 = vpop.f32.mrb[0].mxu0
      %v765 = vadd.f32 0.0, %v764
      %v766 = vpop.f32.mrb[0].mxu0
      %767 = vdwg.mxu0
      %v768 = vpack.c.bf16 %v741, %v738
      %v769 = vpack.c.bf16 %v749, %v746
      %v770 = vpack.c.bf16 %v757, %v754
      %v771 = vpack.c.bf16 %v765, %v762
      %v772 = vlaneseq
      %v773 = vshrl.u32 %v772, 7
      %v774 = vsub.s32 0, %v773
      %v775 = vrot.slane %v678, %v774
      %776 = vmatprep.subr.bf16.mxu0 0
      %777 = vmatpush1.bf16.msra.mxu0 %v768
      %778 = vmatprep.subr.bf16.mxu0 0
      %779 = vmatpush1.bf16.msra.mxu0 %v769
      %780 = vmatprep.subr.bf16.mxu0 0
      %781 = vmatpush1.bf16.msra.mxu0 %v770
      %782 = vmatprep.subr.bf16.mxu0 0
      %783 = vmatpush1.bf16.msra.mxu0 %v771
      %784 = vmatprep.subr.bf16.mxu0 0
      %785 = vmatpush1.bf16.msra.mxu0 0
      %786 = vmatprep.subr.bf16.mxu0 0
      %787 = vmatpush1.bf16.msra.mxu0 0
      %788 = vmatprep.subr.bf16.mxu0 0
      %789 = vmatpush1.bf16.msra.mxu0 0
      %790 = vmatprep.subr.bf16.mxu0 0
      %791 = vmatpush1.bf16.msra.mxu0 0
      %792 = vmatprep.subr.bf16.mxu0 0
      %793 = vmatpush1.bf16.msra.mxu0 0
      %794 = vmatprep.subr.bf16.mxu0 0
      %795 = vmatpush1.bf16.msra.mxu0 0
      %796 = vmatprep.subr.bf16.mxu0 0
      %797 = vmatpush1.bf16.msra.mxu0 0
      %798 = vmatprep.subr.bf16.mxu0 0
      %799 = vmatpush1.bf16.msra.mxu0 0
      %800 = vmatprep.subr.bf16.mxu0 0
      %801 = vmatpush1.bf16.msra.mxu0 0
      %802 = vmatprep.subr.bf16.mxu0 0
      %803 = vmatpush1.bf16.msra.mxu0 0
      %804 = vmatprep.subr.bf16.mxu0 0
      %805 = vmatpush1.bf16.msra.mxu0 0
      %806 = vmatprep.subr.bf16.mxu0 0
      %807 = vmatpush1.bf16.msra.mxu0 0
      %808 = vmatprep.mubr.bf16.mxu0 0
      %809 = vmatmul.mubr.bf16.gmra.mrb[0].mxu0 %v308
      %v810 = vpop.f32.mrb[0].mxu0
      %v811 = vadd.f32 %v775, %v810
      %v812 = vpop.f32.mrb[0].mxu0
      %v813 = vpop.f32.mrb[0].mxu0
      %v814 = vadd.f32 %v775, %v813
      %v815 = vpop.f32.mrb[0].mxu0
      %816 = vmatprep.mubr.bf16.mxu0 0
      %817 = vmatmul.mubr.bf16.gmra.mrb[0].mxu0 %v311
      %v818 = vpop.f32.mrb[0].mxu0
      %v819 = vadd.f32 %v775, %v818
      %v820 = vpop.f32.mrb[0].mxu0
      %v821 = vpop.f32.mrb[0].mxu0
      %v822 = vadd.f32 %v775, %v821
      %v823 = vpop.f32.mrb[0].mxu0
      %824 = vmatprep.mubr.bf16.mxu0 0
      %825 = vmatmul.mubr.bf16.gmra.mrb[0].mxu0 %v314
      %v826 = vpop.f32.mrb[0].mxu0
      %v827 = vadd.f32 %v775, %v826
      %v828 = vpop.f32.mrb[0].mxu0
      %v829 = vpop.f32.mrb[0].mxu0
      %v830 = vadd.f32 %v775, %v829
      %v831 = vpop.f32.mrb[0].mxu0
      %832 = vmatprep.mubr.bf16.mxu0 0
      %833 = vmatmul.mubr.bf16.gmra.mrb[0].mxu0 %v317
      %v834 = vpop.f32.mrb[0].mxu0
      %v835 = vadd.f32 %v775, %v834
      %v836 = vpop.f32.mrb[0].mxu0
      %v837 = vpop.f32.mrb[0].mxu0
      %v838 = vadd.f32 %v775, %v837
      %v839 = vpop.f32.mrb[0].mxu0
      %840 = vdwg.mxu0
      %v841 = vmax.f32 %v811, 0.0
      %v842 = vmax.f32 %v814, 0.0
      %v843 = vmax.f32 %v819, 0.0
      %v844 = vmax.f32 %v822, 0.0
      %v845 = vmax.f32 %v827, 0.0
      %v846 = vmax.f32 %v830, 0.0
      %v847 = vmax.f32 %v835, 0.0
      %v848 = vmax.f32 %v838, 0.0
      %v849 = vadd.f32 %v841, %v662
      %v850 = vadd.f32 %v842, %v663
      %v851 = vadd.f32 %v843, %v664
      %v852 = vadd.f32 %v844, %v665
      %v853 = vadd.f32 %v845, %v666
      %v854 = vadd.f32 %v846, %v667
      %v855 = vadd.f32 %v847, %v668
      %v856 = vadd.f32 %v848, %v669
      %v857 = vpack.c.bf16 %v850, %v849
      %v858 = vpack.c.bf16 %v852, %v851
      %v859 = vpack.c.bf16 %v854, %v853
      %v860 = vpack.c.bf16 %v856, %v855
      %v861 = vld [vmem:[%s3 + $0x28] sm:$0xf]
      %v862 = vld [vmem:[%s3 + $0x2c] sm:$0xf]
      %v863 = vld [vmem:[%s3 + $0x30] sm:$0xf]
      %v864 = vld [vmem:[%s3 + $0x34] sm:$0xf]
      %v865 = vld [vmem:[%s4 + $0x3] sm:$0x1]
      %v870 = vunpack.c.l.b16 %v861
      %v871 = vunpack.c.l.b16 %v862
      %v872 = vunpack.c.l.b16 %v863
      %v873 = vunpack.c.l.b16 %v864
      %v874 = vpack.c.b16 %v871, %v870
      %v875 = vpack.c.b16 %v873, %v872
      %v879 = vsel %vm503, %v857, 0
      %v882 = vsel %vm503, %v858, 0
      %v885 = vsel %vm503, %v859, 0
      %v888 = vsel %vm503, %v860, 0
      %890 = vmatprep.subr.bf16.mxu0 0
      %891 = vmatpush1.bf16.msra.mxu0 %v874
      %892 = vmatprep.subr.bf16.mxu0 0
      %893 = vmatpush1.bf16.msra.mxu0 %v875
      %894 = vmatprep.subr.bf16.mxu0 0
      %895 = vmatpush1.bf16.msra.mxu0 0
      %896 = vmatprep.subr.bf16.mxu0 0
      %897 = vmatpush1.bf16.msra.mxu0 0
      %898 = vmatprep.subr.bf16.mxu0 0
      %899 = vmatpush1.bf16.msra.mxu0 0
      %900 = vmatprep.subr.bf16.mxu0 0
      %901 = vmatpush1.bf16.msra.mxu0 0
      %902 = vmatprep.subr.bf16.mxu0 0
      %903 = vmatpush1.bf16.msra.mxu0 0
      %904 = vmatprep.subr.bf16.mxu0 0
      %905 = vmatpush1.bf16.msra.mxu0 0
      %906 = vmatprep.subr.bf16.mxu0 0
      %907 = vmatpush1.bf16.msra.mxu0 0
      %908 = vmatprep.subr.bf16.mxu0 0
      %909 = vmatpush1.bf16.msra.mxu0 0
      %910 = vmatprep.subr.bf16.mxu0 0
      %911 = vmatpush1.bf16.msra.mxu0 0
      %912 = vmatprep.subr.bf16.mxu0 0
      %913 = vmatpush1.bf16.msra.mxu0 0
      %914 = vmatprep.subr.bf16.mxu0 0
      %915 = vmatpush1.bf16.msra.mxu0 0
      %916 = vmatprep.subr.bf16.mxu0 0
      %917 = vmatpush1.bf16.msra.mxu0 0
      %918 = vmatprep.subr.bf16.mxu0 0
      %919 = vmatpush1.bf16.msra.mxu0 0
      %920 = vmatprep.subr.bf16.mxu0 0
      %921 = vmatpush1.bf16.msra.mxu0 0
      %922 = vmatprep.mubr.bf16.mxu0 0
      %923 = vmatmul.mubr.bf16.gmra.mrb[0].mxu0 %v879
      %v924 = vpop.f32.mrb[0].mxu0
      %v925 = vadd.f32 0.0, %v924
      %v926 = vpop.f32.mrb[0].mxu0
      %v927 = vpop.f32.mrb[0].mxu0
      %v928 = vadd.f32 0.0, %v927
      %v929 = vpop.f32.mrb[0].mxu0
      %930 = vmatprep.mubr.bf16.mxu0 0
      %931 = vmatmul.mubr.bf16.gmra.mrb[0].mxu0 %v882
      %v932 = vpop.f32.mrb[0].mxu0
      %v933 = vadd.f32 0.0, %v932
      %v934 = vpop.f32.mrb[0].mxu0
      %v935 = vpop.f32.mrb[0].mxu0
      %v936 = vadd.f32 0.0, %v935
      %v937 = vpop.f32.mrb[0].mxu0
      %938 = vmatprep.mubr.bf16.mxu0 0
      %939 = vmatmul.mubr.bf16.gmra.mrb[0].mxu0 %v885
      %v940 = vpop.f32.mrb[0].mxu0
      %v941 = vadd.f32 0.0, %v940
      %v942 = vpop.f32.mrb[0].mxu0
      %v943 = vpop.f32.mrb[0].mxu0
      %v944 = vadd.f32 0.0, %v943
      %v945 = vpop.f32.mrb[0].mxu0
      %946 = vmatprep.mubr.bf16.mxu0 0
      %947 = vmatmul.mubr.bf16.gmra.mrb[0].mxu0 %v888
      %v948 = vpop.f32.mrb[0].mxu0
      %v949 = vadd.f32 0.0, %v948
      %v950 = vpop.f32.mrb[0].mxu0
      %v951 = vpop.f32.mrb[0].mxu0
      %v952 = vadd.f32 0.0, %v951
      %v953 = vpop.f32.mrb[0].mxu0
      %954 = vdwg.mxu0
      %v955 = vpack.c.bf16 %v928, %v925
      %v956 = vpack.c.bf16 %v936, %v933
      %v957 = vpack.c.bf16 %v944, %v941
      %v958 = vpack.c.bf16 %v952, %v949
      %v959 = vlaneseq
      %v960 = vshrl.u32 %v959, 7
      %v961 = vsub.s32 0, %v960
      %v962 = vrot.slane %v865, %v961
      %963 = vmatprep.subr.bf16.mxu0 0
      %964 = vmatpush1.bf16.msra.mxu0 %v955
      %965 = vmatprep.subr.bf16.mxu0 0
      %966 = vmatpush1.bf16.msra.mxu0 %v956
      %967 = vmatprep.subr.bf16.mxu0 0
      %968 = vmatpush1.bf16.msra.mxu0 %v957
      %969 = vmatprep.subr.bf16.mxu0 0
      %970 = vmatpush1.bf16.msra.mxu0 %v958
      %971 = vmatprep.subr.bf16.mxu0 0
      %972 = vmatpush1.bf16.msra.mxu0 0
      %973 = vmatprep.subr.bf16.mxu0 0
      %974 = vmatpush1.bf16.msra.mxu0 0
      %975 = vmatprep.subr.bf16.mxu0 0
      %976 = vmatpush1.bf16.msra.mxu0 0
      %977 = vmatprep.subr.bf16.mxu0 0
      %978 = vmatpush1.bf16.msra.mxu0 0
      %979 = vmatprep.subr.bf16.mxu0 0
      %980 = vmatpush1.bf16.msra.mxu0 0
      %981 = vmatprep.subr.bf16.mxu0 0
      %982 = vmatpush1.bf16.msra.mxu0 0
      %983 = vmatprep.subr.bf16.mxu0 0
      %984 = vmatpush1.bf16.msra.mxu0 0
      %985 = vmatprep.subr.bf16.mxu0 0
      %986 = vmatpush1.bf16.msra.mxu0 0
      %987 = vmatprep.subr.bf16.mxu0 0
      %988 = vmatpush1.bf16.msra.mxu0 0
      %989 = vmatprep.subr.bf16.mxu0 0
      %990 = vmatpush1.bf16.msra.mxu0 0
      %991 = vmatprep.subr.bf16.mxu0 0
      %992 = vmatpush1.bf16.msra.mxu0 0
      %993 = vmatprep.subr.bf16.mxu0 0
      %994 = vmatpush1.bf16.msra.mxu0 0
      %995 = vmatprep.mubr.bf16.mxu0 0
      %996 = vmatmul.mubr.bf16.gmra.mrb[0].mxu0 %v308
      %v997 = vpop.f32.mrb[0].mxu0
      %v998 = vadd.f32 %v962, %v997
      %v999 = vpop.f32.mrb[0].mxu0
      %v1000 = vpop.f32.mrb[0].mxu0
      %v1001 = vadd.f32 %v962, %v1000
      %v1002 = vpop.f32.mrb[0].mxu0
      %1003 = vmatprep.mubr.bf16.mxu0 0
      %1004 = vmatmul.mubr.bf16.gmra.mrb[0].mxu0 %v311
      %v1005 = vpop.f32.mrb[0].mxu0
      %v1006 = vadd.f32 %v962, %v1005
      %v1007 = vpop.f32.mrb[0].mxu0
      %v1008 = vpop.f32.mrb[0].mxu0
      %v1009 = vadd.f32 %v962, %v1008
      %v1010 = vpop.f32.mrb[0].mxu0
      %1011 = vmatprep.mubr.bf16.mxu0 0
      %1012 = vmatmul.mubr.bf16.gmra.mrb[0].mxu0 %v314
      %v1013 = vpop.f32.mrb[0].mxu0
      %v1014 = vadd.f32 %v962, %v1013
      %v1015 = vpop.f32.mrb[0].mxu0
      %v1016 = vpop.f32.mrb[0].mxu0
      %v1017 = vadd.f32 %v962, %v1016
      %v1018 = vpop.f32.mrb[0].mxu0
      %1019 = vmatprep.mubr.bf16.mxu0 0
      %1020 = vmatmul.mubr.bf16.gmra.mrb[0].mxu0 %v317
      %v1021 = vpop.f32.mrb[0].mxu0
      %v1022 = vadd.f32 %v962, %v1021
      %v1023 = vpop.f32.mrb[0].mxu0
      %v1024 = vpop.f32.mrb[0].mxu0
      %v1025 = vadd.f32 %v962, %v1024
      %v1026 = vpop.f32.mrb[0].mxu0
      %1027 = vdwg.mxu0
      %v1028 = vmax.f32 %v998, 0.0
      %v1029 = vmax.f32 %v1001, 0.0
      %v1030 = vmax.f32 %v1006, 0.0
      %v1031 = vmax.f32 %v1009, 0.0
      %v1032 = vmax.f32 %v1014, 0.0
      %v1033 = vmax.f32 %v1017, 0.0
      %v1034 = vmax.f32 %v1022, 0.0
      %v1035 = vmax.f32 %v1025, 0.0
      %v1036 = vadd.f32 %v1028, %v849
      %v1037 = vadd.f32 %v1029, %v850
      %v1038 = vadd.f32 %v1030, %v851
      %v1039 = vadd.f32 %v1031, %v852
      %v1040 = vadd.f32 %v1032, %v853
      %v1041 = vadd.f32 %v1033, %v854
      %v1042 = vadd.f32 %v1034, %v855
      %v1043 = vadd.f32 %v1035, %v856
      %v1044 = vpack.c.bf16 %v1037, %v1036
      %v1045 = vpack.c.bf16 %v1039, %v1038
      %v1046 = vpack.c.bf16 %v1041, %v1040
      %v1047 = vpack.c.bf16 %v1043, %v1042
      %v1048 = vld [vmem:[%s2] sm:$0x3]
      %v1050 = vsel %vm306, %v1048, 0
      %1052 = vmatprep.subr.bf16.mxu0 0
      %1053 = vmatpush1.bf16.msra.mxu0 %v1044
      %1054 = vmatprep.subr.bf16.mxu0 0
      %1055 = vmatpush1.bf16.msra.mxu0 %v1045
      %1056 = vmatprep.subr.bf16.mxu0 0
      %1057 = vmatpush1.bf16.msra.mxu0 %v1046
      %1058 = vmatprep.subr.bf16.mxu0 0
      %1059 = vmatpush1.bf16.msra.mxu0 %v1047
      %1060 = vmatprep.subr.bf16.mxu0 0
      %1061 = vmatpush1.bf16.msra.mxu0 0
      %1062 = vmatprep.subr.bf16.mxu0 0
      %1063 = vmatpush1.bf16.msra.mxu0 0
      %1064 = vmatprep.subr.bf16.mxu0 0
      %1065 = vmatpush1.bf16.msra.mxu0 0
      %1066 = vmatprep.subr.bf16.mxu0 0
      %1067 = vmatpush1.bf16.msra.mxu0 0
      %1068 = vmatprep.subr.bf16.mxu0 0
      %1069 = vmatpush1.bf16.msra.mxu0 0
      %1070 = vmatprep.subr.bf16.mxu0 0
      %1071 = vmatpush1.bf16.msra.mxu0 0
      %1072 = vmatprep.subr.bf16.mxu0 0
      %1073 = vmatpush1.bf16.msra.mxu0 0
      %1074 = vmatprep.subr.bf16.mxu0 0
      %1075 = vmatpush1.bf16.msra.mxu0 0
      %1076 = vmatprep.subr.bf16.mxu0 0
      %1077 = vmatpush1.bf16.msra.mxu0 0
      %1078 = vmatprep.subr.bf16.mxu0 0
      %1079 = vmatpush1.bf16.msra.mxu0 0
      %1080 = vmatprep.subr.bf16.mxu0 0
      %1081 = vmatpush1.bf16.msra.mxu0 0
      %1082 = vmatprep.subr.bf16.mxu0 0
      %1083 = vmatpush1.bf16.msra.mxu0 0
      %1084 = vmatprep.mubr.bf16.mxu0 0
      %1085 = vmatmul.mubr.bf16.gmra.mrb[0].mxu0 %v1050
      %v1086 = vpop.f32.mrb[0].mxu0
      %v1087 = vadd.f32 0.0, %v1086
      %v1088 = vpop.f32.mrb[0].mxu0
      %v1089 = vpop.f32.mrb[0].mxu0
      %v1090 = vpop.f32.mrb[0].mxu0
      %1091 = vdwg.mxu0
      %v1092 = vld [vmem:[%s3 + $0x38] sm:$0xf]
      %v1093 = vld [vmem:[%s3 + $0x3c] sm:$0xf]
      %v1094 = vld [vmem:[%s3 + $0x40] sm:$0xf]
      %v1095 = vld [vmem:[%s3 + $0x44] sm:$0xf]
      %v1096 = vld [vmem:[%s4 + $0x4] sm:$0x1]
      %v1097 = vld [vmem:[%s3 + $0x48] sm:$0xf]
      %v1098 = vld [vmem:[%s3 + $0x4c] sm:$0xf]
      %v1099 = vld [vmem:[%s3 + $0x50] sm:$0xf]
      %v1100 = vld [vmem:[%s3 + $0x54] sm:$0xf]
      %v1101 = vld [vmem:[%s3 + $0x58] sm:$0xf]
      %v1102 = vld [vmem:[%s3 + $0x5c] sm:$0xf]
      %v1103 = vld [vmem:[%s3 + $0x60] sm:$0xf]
      %v1104 = vld [vmem:[%s3 + $0x64] sm:$0xf]
      %v1105 = vld [vmem:[%s4 + $0x5] sm:$0x1]
      %v1106 = vld [vmem:[%s3 + $0x68] sm:$0xf]
      %v1107 = vld [vmem:[%s3 + $0x6c] sm:$0xf]
      %v1108 = vld [vmem:[%s3 + $0x70] sm:$0xf]
      %v1109 = vld [vmem:[%s3 + $0x74] sm:$0xf]
      %v1110 = vld [vmem:[%s4 + $0x6] sm:$0x1]
      %v1111 = vpack.c.bf16 %v1087, %v1087
      %v1112 = vlaneseq
      %v1113 = vshrl.u32 %v1112, 7
      %v1114 = vsub.s32 0, %v1113
      %v1115 = vrot.slane %v1096, %v1114
      %v1120 = vunpack.c.l.b16 %v1092
      %v1121 = vunpack.c.l.b16 %v1093
      %v1122 = vunpack.c.l.b16 %v1094
      %v1123 = vunpack.c.l.b16 %v1095
      %v1124 = vpack.c.b16 %v1121, %v1120
      %v1125 = vpack.c.b16 %v1123, %v1122
      %v1129 = vsel %vm503, %v1111, 0
      %1131 = vmatprep.subr.bf16.mxu0 0
      %1132 = vmatpush1.bf16.msra.mxu0 %v1124
      %1133 = vmatprep.subr.bf16.mxu0 0
      %1134 = vmatpush1.bf16.msra.mxu0 %v1125
      %1135 = vmatprep.subr.bf16.mxu0 0
      %1136 = vmatpush1.bf16.msra.mxu0 0
      %1137 = vmatprep.subr.bf16.mxu0 0
      %1138 = vmatpush1.bf16.msra.mxu0 0
      %1139 = vmatprep.subr.bf16.mxu0 0
      %1140 = vmatpush1.bf16.msra.mxu0 0
      %1141 = vmatprep.subr.bf16.mxu0 0
      %1142 = vmatpush1.bf16.msra.mxu0 0
      %1143 = vmatprep.subr.bf16.mxu0 0
      %1144 = vmatpush1.bf16.msra.mxu0 0
      %1145 = vmatprep.subr.bf16.mxu0 0
      %1146 = vmatpush1.bf16.msra.mxu0 0
      %1147 = vmatprep.subr.bf16.mxu0 0
      %1148 = vmatpush1.bf16.msra.mxu0 0
      %1149 = vmatprep.subr.bf16.mxu0 0
      %1150 = vmatpush1.bf16.msra.mxu0 0
      %1151 = vmatprep.subr.bf16.mxu0 0
      %1152 = vmatpush1.bf16.msra.mxu0 0
      %1153 = vmatprep.subr.bf16.mxu0 0
      %1154 = vmatpush1.bf16.msra.mxu0 0
      %1155 = vmatprep.subr.bf16.mxu0 0
      %1156 = vmatpush1.bf16.msra.mxu0 0
      %1157 = vmatprep.subr.bf16.mxu0 0
      %1158 = vmatpush1.bf16.msra.mxu0 0
      %1159 = vmatprep.subr.bf16.mxu0 0
      %1160 = vmatpush1.bf16.msra.mxu0 0
      %1161 = vmatprep.subr.bf16.mxu0 0
      %1162 = vmatpush1.bf16.msra.mxu0 0
      %1163 = vmatprep.mubr.bf16.mxu0 0
      %1164 = vmatmul.mubr.bf16.gmra.mrb[0].mxu0 %v1129
      %v1165 = vpop.f32.mrb[0].mxu0
      %v1166 = vadd.f32 %v1115, %v1165
      %v1167 = vpop.f32.mrb[0].mxu0
      %v1168 = vpop.f32.mrb[0].mxu0
      %v1169 = vpop.f32.mrb[0].mxu0
      %1170 = vdwg.mxu0
      %v1171 = vmax.f32 %v1166, 0.0
      %v1172 = vpack.c.bf16 %v1171, %v1171
      %v1173 = vlaneseq
      %v1174 = vshrl.u32 %v1173, 7
      %v1175 = vsub.s32 0, %v1174
      %v1176 = vrot.slane %v1105, %v1175
      %v1185 = vunpack.c.l.b16 %v1097
      %v1186 = vunpack.c.l.b16 %v1098
      %v1187 = vunpack.c.l.b16 %v1099
      %v1188 = vunpack.c.l.b16 %v1100
      %v1189 = vunpack.c.l.b16 %v1101
      %v1190 = vunpack.c.l.b16 %v1102
      %v1191 = vunpack.c.l.b16 %v1103
      %v1192 = vunpack.c.l.b16 %v1104
      %v1193 = vpack.c.b16 %v1186, %v1185
      %v1194 = vpack.c.b16 %v1188, %v1187
      %v1195 = vpack.c.b16 %v1190, %v1189
      %v1196 = vpack.c.b16 %v1192, %v1191
      %v1202 = vsel %vm306, %v1172, 0
      %1204 = vmatprep.subr.bf16.mxu0 0
      %1205 = vmatpush1.bf16.msra.mxu0 %v1193
      %1206 = vmatprep.subr.bf16.mxu0 0
      %1207 = vmatpush1.bf16.msra.mxu0 %v1194
      %1208 = vmatprep.subr.bf16.mxu0 0
      %1209 = vmatpush1.bf16.msra.mxu0 %v1195
      %1210 = vmatprep.subr.bf16.mxu0 0
      %1211 = vmatpush1.bf16.msra.mxu0 %v1196
      %1212 = vmatprep.subr.bf16.mxu0 0
      %1213 = vmatpush1.bf16.msra.mxu0 0
      %1214 = vmatprep.subr.bf16.mxu0 0
      %1215 = vmatpush1.bf16.msra.mxu0 0
      %1216 = vmatprep.subr.bf16.mxu0 0
      %1217 = vmatpush1.bf16.msra.mxu0 0
      %1218 = vmatprep.subr.bf16.mxu0 0
      %1219 = vmatpush1.bf16.msra.mxu0 0
      %1220 = vmatprep.subr.bf16.mxu0 0
      %1221 = vmatpush1.bf16.msra.mxu0 0
      %1222 = vmatprep.subr.bf16.mxu0 0
      %1223 = vmatpush1.bf16.msra.mxu0 0
      %1224 = vmatprep.subr.bf16.mxu0 0
      %1225 = vmatpush1.bf16.msra.mxu0 0
      %1226 = vmatprep.subr.bf16.mxu0 0
      %1227 = vmatpush1.bf16.msra.mxu0 0
      %1228 = vmatprep.subr.bf16.mxu0 0
      %1229 = vmatpush1.bf16.msra.mxu0 0
      %1230 = vmatprep.subr.bf16.mxu0 0
      %1231 = vmatpush1.bf16.msra.mxu0 0
      %1232 = vmatprep.subr.bf16.mxu0 0
      %1233 = vmatpush1.bf16.msra.mxu0 0
      %1234 = vmatprep.subr.bf16.mxu0 0
      %1235 = vmatpush1.bf16.msra.mxu0 0
      %1236 = vmatprep.mubr.bf16.mxu0 0
      %1237 = vmatmul.mubr.bf16.gmra.mrb[0].mxu0 %v1202
      %v1238 = vpop.f32.mrb[0].mxu0
      %v1239 = vadd.f32 %v1176, %v1238
      %v1240 = vpop.f32.mrb[0].mxu0
      %v1241 = vpop.f32.mrb[0].mxu0
      %v1242 = vpop.f32.mrb[0].mxu0
      %1243 = vdwg.mxu0
      %v1244 = vmax.f32 %v1239, 0.0
      %v1245 = vpack.c.bf16 %v1244, %v1244
      %v1246 = vlaneseq
      %v1247 = vshrl.u32 %v1246, 7
      %v1248 = vsub.s32 0, %v1247
      %v1249 = vrot.slane %v1110, %v1248
      %v1254 = vunpack.c.l.b16 %v1106
      %v1255 = vunpack.c.l.b16 %v1107
      %v1256 = vunpack.c.l.b16 %v1108
      %v1257 = vunpack.c.l.b16 %v1109
      %v1258 = vpack.c.b16 %v1255, %v1254
      %v1259 = vpack.c.b16 %v1257, %v1256
      %v1263 = vsel %vm503, %v1245, 0
      %1265 = vmatprep.subr.bf16.mxu0 0
      %1266 = vmatpush1.bf16.msra.mxu0 %v1258
      %1267 = vmatprep.subr.bf16.mxu0 0
      %1268 = vmatpush1.bf16.msra.mxu0 %v1259
      %1269 = vmatprep.subr.bf16.mxu0 0
      %1270 = vmatpush1.bf16.msra.mxu0 0
      %1271 = vmatprep.subr.bf16.mxu0 0
      %1272 = vmatpush1.bf16.msra.mxu0 0
      %1273 = vmatprep.subr.bf16.mxu0 0
      %1274 = vmatpush1.bf16.msra.mxu0 0
      %1275 = vmatprep.subr.bf16.mxu0 0
      %1276 = vmatpush1.bf16.msra.mxu0 0
      %1277 = vmatprep.subr.bf16.mxu0 0
      %1278 = vmatpush1.bf16.msra.mxu0 0
      %1279 = vmatprep.subr.bf16.mxu0 0
      %1280 = vmatpush1.bf16.msra.mxu0 0
      %1281 = vmatprep.subr.bf16.mxu0 0
      %1282 = vmatpush1.bf16.msra.mxu0 0
      %1283 = vmatprep.subr.bf16.mxu0 0
      %1284 = vmatpush1.bf16.msra.mxu0 0
      %1285 = vmatprep.subr.bf16.mxu0 0
      %1286 = vmatpush1.bf16.msra.mxu0 0
      %1287 = vmatprep.subr.bf16.mxu0 0
      %1288 = vmatpush1.bf16.msra.mxu0 0
      %1289 = vmatprep.subr.bf16.mxu0 0
      %1290 = vmatpush1.bf16.msra.mxu0 0
      %1291 = vmatprep.subr.bf16.mxu0 0
      %1292 = vmatpush1.bf16.msra.mxu0 0
      %1293 = vmatprep.subr.bf16.mxu0 0
      %1294 = vmatpush1.bf16.msra.mxu0 0
      %1295 = vmatprep.subr.bf16.mxu0 0
      %1296 = vmatpush1.bf16.msra.mxu0 0
      %1297 = vmatprep.mubr.bf16.mxu0 0
      %1298 = vmatmul.mubr.bf16.gmra.mrb[0].mxu0 %v1263
      %v1299 = vpop.f32.mrb[0].mxu0
      %v1300 = vadd.f32 %v1249, %v1299
      %v1301 = vpop.f32.mrb[0].mxu0
      %v1302 = vpop.f32.mrb[0].mxu0
      %v1303 = vpop.f32.mrb[0].mxu0
      %1304 = vdwg.mxu0
      %1305 = vst [vmem:[%s242] sm:$0xf] %v1300
      %p1306 = scmp.lt.s32.totalorder %s16, 1
      %s1307 = scalar_select %p1306, %s16, 1
      %s1308 = smul.addr %s1307, 4
      %s1309 = scalar_lea.vmem %s5, %s1308
      // Predicated region
      $region41: #{improved_gnn_forward.1} parent=39 // pred_check
        %p1310 = pneg %p149
      $region42: #{improved_gnn_forward.1} parent=39 // pred_check_branch
        %1312 = sbr.rel (%p1310) target = $region44
      $region43: #{improved_gnn_forward.1} parent=39 // pred_region
        _
      $region44: #{improved_gnn_forward.1} parent=39 // pred_fallthru
        _
    $region40: #{improved_gnn_forward.1} parent=5 // pred_fallthru
      _
    %p1313 = scmp.le.s32.totalorder 2, %s11
    // Predicated region
    $region45: #{improved_gnn_forward.1} parent=5 // pred_check
      %p1314 = pneg %p1313
    $region46: #{improved_gnn_forward.1} parent=5 // pred_check_branch
      %1316 = sbr.rel (%p1314) target = $region48
    $region47: #{improved_gnn_forward.1} parent=5 // pred_region
      %s1317 = ssub.s32 %s11, 2
      // Predicated region
      $region49: #{improved_gnn_forward.1} parent=47 // pred_check
        %p1318 = pneg %p155
      $region50: #{improved_gnn_forward.1} parent=47 // pred_check_branch
        %1320 = sbr.rel (%p1318) target = $region52
      $region51: #{improved_gnn_forward.1} parent=47 // pred_region
        %p1321 = scmp.lt.s32.totalorder %s17, 1
        %s1322 = scalar_select %p1321, %s17, 1
        %s1323 = smul.addr %s1322, 4
        %s1324 = scalar_lea.vmem %s5, %s1323
      $region52: #{improved_gnn_forward.1} parent=47 // pred_fallthru
        _
    $region48: #{improved_gnn_forward.1} parent=5 // pred_fallthru
      _
  $region6: #{improved_gnn_forward.1} parent=0 // loop_footer
    %s15 = sadd.s32 1, %s11
  $region7: #{improved_gnn_forward.1} parent=0 // loop_footer_branch
    %10 = sbr.rel target = $region3
  $region8: #{improved_gnn_forward.1} parent=0 // loop_exit
    _

</llo_original>
